<compile_context>
chip_gen: v7x
topology: tpu7x:2x2x1
jax: 0.10.0
libtpu: 0.0.40
codegen_flags: <defaults>
</compile_context>

<pallas_src>
import functools
import math

import jax
import jax.numpy as jnp
from jax.experimental import pallas as pl
from jax.experimental.pallas import tpu as pltpu

LN_EPS = 1e-5
LANE = 128


# --------------------------------------------------------------------------- #
# Kernel
# --------------------------------------------------------------------------- #
def _gnn_edge_kernel(x_ref, edge_ref, w_ref, ln_ref, xo_ref, eo_ref, *, c_true):
    # x_ref    : (G, n, c)     node features of G graphs   (c = padded, lane-dense)
    # edge_ref : (G, n*n, c)   edge features, row = i*n + j
    # w_ref    : (c, 5c)       packed, pre-transposed [A1 | B1 | U1 | V1 | E1]
    # ln_ref   : (4, c)        [gamma_e, beta_e, gamma_v, beta_v] (zero-padded)
    # xo_ref   : (G, n, c)     updated node features
    # eo_ref   : (G, n*n, c)   updated edge features
    g, n, c = x_ref.shape
    nn = n * n
    inv_c = 1.0 / c_true          # LN stats over the TRUE channel count
    inv_n = 1.0 / n

    x = x_ref[...]                # (G, n, c)
    edge = edge_ref[...]          # (G, n*n, c)

    # ---- projections on the MXU --------------------------------------------
    # x-side: one (G*n, c) x (c, 4c) matmul, lane-sliced into A1,B1,U1,V1.
    # (n is a multiple of 8 at the shapes used here, so these reshapes are
    #  layout no-ops; they stay correct — just slower — otherwise.)
    xf = x.reshape(g * n, c)
    px = jnp.dot(xf, w_ref[:, 0:4 * c], preferred_element_type=jnp.float32)
    ax = px[:, 0 * c:1 * c].reshape(g, n, c)      # A1(x)
    bx = px[:, 1 * c:2 * c].reshape(g, n, c)      # B1(x)
    ux = px[:, 2 * c:3 * c].reshape(g, n, c)      # U1(x)
    vx = px[:, 3 * c:4 * c].reshape(g, n, c)      # V1(x)

    # edge-side: (G*n*n, c) x (c, c)
    ef = edge.reshape(g * nn, c)
    ex = jnp.dot(ef, w_ref[:, 4 * c:5 * c],
                 preferred_element_type=jnp.float32).reshape(g, n, n, c)

    lnp = ln_ref[...]                              # (4, c)
    gamma_e = lnp[0:1].reshape(1, 1, 1, c)
    beta_e = lnp[1:2].reshape(1, 1, 1, c)
    gamma_v = lnp[2:3].reshape(1, 1, c)
    beta_v = lnp[3:4].reshape(1, 1, c)

    # ---- edge update: edge += relu(LN(A1(x)_i + B1(x)_j + E1(edge)_ij)) ----
    # (the one-hot start/end incidence matmuls of the PyTorch module are
    #  realized as index broadcasts over the (i, j) edge grid)
    m = ax[:, :, None, :] + bx[:, None, :, :] + ex            # (G, n, n, c)
    mean = jnp.sum(m, axis=-1, keepdims=True) * inv_c
    meansq = jnp.sum(m * m, axis=-1, keepdims=True) * inv_c
    var = jnp.maximum(meansq - mean * mean, 0.0)               # clamp cancellation
    m_norm = (m - mean) * jax.lax.rsqrt(var + LN_EPS) * gamma_e + beta_e
    edge_new = (edge.reshape(g, n, n, c).astype(jnp.float32)
                + jnp.maximum(m_norm, 0.0))                    # (G, n, n, c)
    eo_ref[...] = edge_new.reshape(g, nn, c).astype(eo_ref.dtype)

    # ---- gating + aggregation (deferred softmax over j) ---------------------
    # sigmoid output is in (0,1) so exp never overflows: skip the max-subtract
    # and normalize AFTER the weighted sum; the normalized attention tensor is
    # never materialized.  Kept in f32 (v5e has no bf16 VPU/EUP).
    s = jnp.exp(1.0 / (1.0 + jnp.exp(-edge_new)))              # (G, n, n, c)
    num = jnp.sum(s * vx[:, None, :, :], axis=2)               # (G, n, c)
    den = jnp.sum(s, axis=2)                                   # (G, n, c), >= n
    agg = num * pl.reciprocal(den, approx=True) * inv_n

    # ---- node update: x = relu(x + LN(U1(x) + agg)) --------------------------
    y = ux + agg
    mean_v = jnp.sum(y, axis=-1, keepdims=True) * inv_c
    meansq_v = jnp.sum(y * y, axis=-1, keepdims=True) * inv_c
    var_v = jnp.maximum(meansq_v - mean_v * mean_v, 0.0)
    y_norm = (y - mean_v) * jax.lax.rsqrt(var_v + LN_EPS) * gamma_v + beta_v
    xo_ref[...] = jnp.maximum(x.astype(jnp.float32) + y_norm, 0.0).astype(xo_ref.dtype)


# --------------------------------------------------------------------------- #
# Parameter packing (hoisted out of the hot path — call once)
# --------------------------------------------------------------------------- #
def _round_up(v, m):
    return (v + m - 1) // m * m


def pack_params(wa, wb, we, wu, wv, gamma_e, beta_e, gamma_v, beta_v,
                lane=LANE, dtype=jnp.float32):
    """Pre-transpose, zero-pad to a lane-dense width and pack all params once.

    Weight layout along the lane axis: [A1^T | B1^T | U1^T | V1^T | E1^T].
    (Use dtype=jnp.bfloat16 here to feed the MXU bf16 on v6e/v7x when the
     activations are bf16.)
    """
    c = wa.shape[0]
    c_pad = _round_up(c, lane)

    def padw(w):  # PyTorch Linear weight is (out, in); the kernel wants (in, out).
        wt = jnp.asarray(w, dtype).T
        return jnp.pad(wt, ((0, c_pad - c), (0, c_pad - c)))

    def padv(v):
        return jnp.pad(jnp.asarray(v, jnp.float32), (0, c_pad - c))

    w_packed = jnp.concatenate(
        [padw(wa), padw(wb), padw(wu), padw(wv), padw(we)], axis=1)        # (c_pad, 5c_pad)
    ln_packed = jnp.stack(
        [padv(gamma_e), padv(beta_e), padv(gamma_v), padv(beta_v)], axis=0)  # (4, c_pad)
    return w_packed, ln_packed


# --------------------------------------------------------------------------- #
# Wrapper
# --------------------------------------------------------------------------- #
def _vmem_limit_bytes():
    """Scoped-VMEM limit sized against the chip generation (with headroom)."""
    cap = None
    try:
        cap = getattr(pltpu.get_tpu_info(), "vmem_capacity_bytes", None)
    except Exception:
        cap = None
    if not cap:
        cap = 64 * 1024 * 1024          # conservative cross-generation fallback
    return min((cap * 3) // 4, 100 * 1024 * 1024)


def _graphs_per_step(b, edge_rows, c_pad, itemsize, vmem_limit):
    """Batch G whole graphs per grid step, sized against the VMEM budget.

    The (G, n*n, c) edge block dominates; keep it to ~1/24 of the scoped limit
    so in+out double buffering plus the f32 (G,n,n,c) gating temporaries fit.
    """
    budget = max(vmem_limit // 24, 256 * 1024)
    per_graph = edge_rows * c_pad * itemsize
    g = max(1, min(b, budget // max(per_graph, 1)))
    while b % g:                        # largest divisor of b not exceeding g
        g -= 1
    return g


def gnn_edge_1layer(x, edge, w_packed, ln_packed):
    """Fused forward of GNN_EDGE_1layer.

    x:         (b, n, c)    node features
    edge:      (b, n*n, c)  edge features (row = i*n + j)
    w_packed:  (c_pad, 5*c_pad) and ln_packed: (4, c_pad) from pack_params().
    Returns (x_out, edge_out) with the same shapes/dtypes as (x, edge).
    """
    b, n, c = x.shape
    nn = n * n
    assert edge.shape == (b, nn, c)
    c_pad = w_packed.shape[0]
    assert w_packed.shape == (c_pad, 5 * c_pad) and ln_packed.shape == (4, c_pad)

    if c_pad != c:   # zero-pad channels to a lane-dense width (sliced back below)
        x_in = jnp.pad(x, ((0, 0), (0, 0), (0, c_pad - c)))
        edge_in = jnp.pad(edge, ((0, 0), (0, 0), (0, c_pad - c)))
    else:
        x_in, edge_in = x, edge

    vmem_limit = _vmem_limit_bytes()
    g = _graphs_per_step(b, nn, c_pad, jnp.dtype(x.dtype).itemsize, vmem_limit)
    grid = (b // g,)

    kernel = functools.partial(_gnn_edge_kernel, c_true=c)

    x_out, edge_out = pl.pallas_call(
        kernel,
        out_shape=(
            jax.ShapeDtypeStruct((b, n, c_pad), x.dtype),
            jax.ShapeDtypeStruct((b, nn, c_pad), edge.dtype),
        ),
        grid_spec=pltpu.PrefetchScalarGridSpec(
            num_scalar_prefetch=0,
            grid=grid,
            in_specs=[
                pl.BlockSpec((g, n, c_pad), lambda i: (i, 0, 0)),
                pl.BlockSpec((g, nn, c_pad), lambda i: (i, 0, 0)),
                pl.BlockSpec((c_pad, 5 * c_pad), lambda i: (0, 0)),
                pl.BlockSpec((4, c_pad), lambda i: (0, 0)),
            ],
            out_specs=(
                pl.BlockSpec((g, n, c_pad), lambda i: (i, 0, 0)),
                pl.BlockSpec((g, nn, c_pad), lambda i: (i, 0, 0)),
            ),
        ),
        compiler_params=pltpu.CompilerParams(
            dimension_semantics=("parallel",),
            vmem_limit_bytes=vmem_limit,
        ),
    )(x_in, edge_in, w_packed, ln_packed)

    if c_pad != c:
        x_out = x_out[..., :c]
        edge_out = edge_out[..., :c]
    return x_out, edge_out


# --------------------------------------------------------------------------- #
# Pure-JAX reference (mirrors the PyTorch forward) and self-test
# --------------------------------------------------------------------------- #
def _reference(x, edge, wa, wb, we, wu, wv, ge, be_, gv, bv):
    b, n, c = x.shape

    def ln(y, g_, bias):
        mean = y.mean(-1, keepdims=True)
        var = ((y - mean) ** 2).mean(-1, keepdims=True)
        return (y - mean) / jnp.sqrt(var + LN_EPS) * g_ + bias

    ax = x @ wa.T
    bx = x @ wb.T
    ex = (edge @ we.T).reshape(b, n, n, c)
    m = ax[:, :, None, :] + bx[:, None, :, :] + ex
    edge_new = edge + jnp.maximum(ln(m, ge, be_), 0.0).reshape(b, n * n, c)

    att = (1.0 / (1.0 + jnp.exp(-edge_new))).reshape(b, n, n, c)
    att = jax.nn.softmax(att, axis=2)

    vx = x @ wv.T
    ux = x @ wu.T
    agg = (att * vx[:, None, :, :]).sum(axis=2) / n
    x_new = jnp.maximum(x + ln(ux + agg, gv, bv), 0.0)
    return x_new, edge_new


if __name__ == "__main__":
    batch, num_nodes, in_channels = 4, 8, 32

    key = jax.random.PRNGKey(0)
    keys = jax.random.split(key, 7)

    x = jax.random.normal(keys[0], (batch, num_nodes, in_channels), jnp.float32)
    edge = jax.random.normal(
        keys[1], (batch, num_nodes * num_nodes, in_channels), jnp.float32)

    # Parameter init mirroring the module: W ~ N(0, sqrt(2/dim_in)), no bias;
    # LayerNorm weight = 1, bias = 0.
    scale = math.sqrt(2.0 / in_channels)
    wa = jax.random.normal(keys[2], (in_channels, in_channels), jnp.float32) * scale
    wb = jax.random.normal(keys[3], (in_channels, in_channels), jnp.float32) * scale
    we = jax.random.normal(keys[4], (in_channels, in_channels), jnp.float32) * scale
    wu = jax.random.normal(keys[5], (in_channels, in_channels), jnp.float32) * scale
    wv = jax.random.normal(keys[6], (in_channels, in_channels), jnp.float32) * scale
    gamma_e = jnp.ones((in_channels,), jnp.float32)
    beta_e = jnp.zeros((in_channels,), jnp.float32)
    gamma_v = jnp.ones((in_channels,), jnp.float32)
    beta_v = jnp.zeros((in_channels,), jnp.float32)

    # Pack / pre-transpose / pad the parameters ONCE, outside the jitted forward.
    w_packed, ln_packed = pack_params(wa, wb, we, wu, wv,
                                      gamma_e, beta_e, gamma_v, beta_v)

    fwd = jax.jit(gnn_edge_1layer)
    x_out, edge_out = fwd(x, edge, w_packed, ln_packed)
    jax.block_until_ready((x_out, edge_out))

    x_exp, edge_exp = _reference(x, edge, wa, wb, we, wu, wv,
                                 gamma_e, beta_e, gamma_v, beta_v)

    assert x_out.shape == x.shape and edge_out.shape == edge.shape
    assert jnp.allclose(x_out, x_exp, atol=2e-3, rtol=2e-3), "node output mismatch"
    assert jnp.allclose(edge_out, edge_exp, atol=2e-3, rtol=2e-3), "edge output mismatch"

    print("KERNEL_OK")
</pallas_src>

<mosaic_0001>
module attributes {stable_mosaic.version = 11 : i64} {
  func.func @_gnn_edge_kernel(%arg0: i32, %arg1: memref<4x8x128xf32, #tpu.memory_space<vmem>>, %arg2: memref<4x64x128xf32, #tpu.memory_space<vmem>>, %arg3: memref<128x640xf32, #tpu.memory_space<vmem>>, %arg4: memref<4x128xf32, #tpu.memory_space<vmem>>, %arg5: memref<4x8x128xf32, #tpu.memory_space<vmem>>, %arg6: memref<4x64x128xf32, #tpu.memory_space<vmem>>) attributes {dimension_semantics = [#tpu.dimension_semantics<parallel>], iteration_bounds = array<i64: 1>, scalar_prefetch = 0 : i64, scratch_operands = 0 : i64, tpu.core_type = #tpu.core_type<tc>, window_params = [{transform_indices = @transform_0, window_bounds = array<i64: 4, 8, 128>}, {transform_indices = @transform_1, window_bounds = array<i64: 4, 64, 128>}, {pipeline_mode = #tpu.pipeline_mode<synchronous>, transform_indices = @transform_2, window_bounds = array<i64: 128, 640>}, {pipeline_mode = #tpu.pipeline_mode<synchronous>, transform_indices = @transform_3, window_bounds = array<i64: 4, 128>}, {transform_indices = @transform_4, window_bounds = array<i64: 4, 8, 128>}, {transform_indices = @transform_5, window_bounds = array<i64: 4, 64, 128>}]} {
    %c0 = arith.constant 0 : index
    %c0_0 = arith.constant 0 : index
    %c0_1 = arith.constant 0 : index
    %0 = vector.load %arg1[%c0, %c0_0, %c0_1] : memref<4x8x128xf32, #tpu.memory_space<vmem>>, vector<4x8x128xf32>
    %c0_2 = arith.constant 0 : index
    %c0_3 = arith.constant 0 : index
    %c0_4 = arith.constant 0 : index
    %1 = vector.load %arg2[%c0_2, %c0_3, %c0_4] : memref<4x64x128xf32, #tpu.memory_space<vmem>>, vector<4x64x128xf32>
    %2 = vector.shape_cast %0 : vector<4x8x128xf32> to vector<32x128xf32>
    %c0_5 = arith.constant 0 : index
    %c0_6 = arith.constant 0 : index
    %3 = vector.load %arg3[%c0_5, %c0_6] : memref<128x640xf32, #tpu.memory_space<vmem>>, vector<128x512xf32>
    %cst = arith.constant dense<0.000000e+00> : vector<32x512xf32>
    %4 = tpu.matmul %2, %3, %cst {dimension_numbers = #tpu.dot_dimension_numbers<[1], [0], [0], [1], [0, 0, 1, 1], [], []>} : vector<32x128xf32>, vector<128x512xf32>, vector<32x512xf32> -> vector<32x512xf32>
    %5 = vector.extract_strided_slice %4 {offsets = [0, 0], sizes = [32, 128], strides = [1, 1]} : vector<32x512xf32> to vector<32x128xf32>
    %6 = vector.shape_cast %5 : vector<32x128xf32> to vector<4x8x128xf32>
    %7 = vector.extract_strided_slice %4 {offsets = [0, 128], sizes = [32, 128], strides = [1, 1]} : vector<32x512xf32> to vector<32x128xf32>
    %8 = vector.shape_cast %7 : vector<32x128xf32> to vector<4x8x128xf32>
    %9 = vector.extract_strided_slice %4 {offsets = [0, 256], sizes = [32, 128], strides = [1, 1]} : vector<32x512xf32> to vector<32x128xf32>
    %10 = vector.shape_cast %9 : vector<32x128xf32> to vector<4x8x128xf32>
    %11 = vector.extract_strided_slice %4 {offsets = [0, 384], sizes = [32, 128], strides = [1, 1]} : vector<32x512xf32> to vector<32x128xf32>
    %12 = vector.shape_cast %11 : vector<32x128xf32> to vector<4x8x128xf32>
    %13 = vector.shape_cast %1 : vector<4x64x128xf32> to vector<256x128xf32>
    %c0_7 = arith.constant 0 : index
    %c512 = arith.constant 512 : index
    %14 = vector.load %arg3[%c0_7, %c512] : memref<128x640xf32, #tpu.memory_space<vmem>>, vector<128x128xf32>
    %cst_8 = arith.constant dense<0.000000e+00> : vector<256x128xf32>
    %15 = tpu.matmul %13, %14, %cst_8 {dimension_numbers = #tpu.dot_dimension_numbers<[1], [0], [0], [1], [0, 0, 1, 1], [], []>} : vector<256x128xf32>, vector<128x128xf32>, vector<256x128xf32> -> vector<256x128xf32>
    %16 = vector.shape_cast %15 : vector<256x128xf32> to vector<4x8x8x128xf32>
    %c0_9 = arith.constant 0 : index
    %c0_10 = arith.constant 0 : index
    %17 = vector.load %arg4[%c0_9, %c0_10] : memref<4x128xf32, #tpu.memory_space<vmem>>, vector<4x128xf32>
    %18 = vector.extract_strided_slice %17 {offsets = [0, 0], sizes = [1, 128], strides = [1, 1]} : vector<4x128xf32> to vector<1x128xf32>
    %19 = vector.shape_cast %18 : vector<1x128xf32> to vector<1x1x1x128xf32>
    %20 = vector.extract_strided_slice %17 {offsets = [1, 0], sizes = [1, 128], strides = [1, 1]} : vector<4x128xf32> to vector<1x128xf32>
    %21 = vector.shape_cast %20 : vector<1x128xf32> to vector<1x1x1x128xf32>
    %22 = vector.extract_strided_slice %17 {offsets = [2, 0], sizes = [1, 128], strides = [1, 1]} : vector<4x128xf32> to vector<1x128xf32>
    %23 = vector.shape_cast %22 : vector<1x128xf32> to vector<1x1x128xf32>
    %24 = vector.extract_strided_slice %17 {offsets = [3, 0], sizes = [1, 128], strides = [1, 1]} : vector<4x128xf32> to vector<1x128xf32>
    %25 = vector.shape_cast %24 : vector<1x128xf32> to vector<1x1x128xf32>
    %26 = vector.shape_cast %6 : vector<4x8x128xf32> to vector<4x8x1x128xf32>
    %27 = vector.shape_cast %8 : vector<4x8x128xf32> to vector<4x1x8x128xf32>
    %28 = vector.broadcast %26 : vector<4x8x1x128xf32> to vector<4x8x8x128xf32>
    %29 = vector.broadcast %27 : vector<4x1x8x128xf32> to vector<4x8x8x128xf32>
    %30 = arith.addf %28, %29 : vector<4x8x8x128xf32>
    %31 = arith.addf %30, %16 : vector<4x8x8x128xf32>
    %cst_11 = arith.constant dense<0.000000e+00> : vector<4x8x8xf32>
    %32 = vector.multi_reduction <add>, %31, %cst_11 [3] : vector<4x8x8x128xf32> to vector<4x8x8xf32>
    %33 = vector.shape_cast %32 : vector<4x8x8xf32> to vector<4x8x8x1xf32>
    %cst_12 = arith.constant 3.125000e-02 : f32
    %34 = vector.broadcast %cst_12 : f32 to vector<4x8x8x1xf32>
    %35 = arith.mulf %33, %34 : vector<4x8x8x1xf32>
    %36 = arith.mulf %31, %31 : vector<4x8x8x128xf32>
    %cst_13 = arith.constant dense<0.000000e+00> : vector<4x8x8xf32>
    %37 = vector.multi_reduction <add>, %36, %cst_13 [3] : vector<4x8x8x128xf32> to vector<4x8x8xf32>
    %38 = vector.shape_cast %37 : vector<4x8x8xf32> to vector<4x8x8x1xf32>
    %cst_14 = arith.constant 3.125000e-02 : f32
    %39 = vector.broadcast %cst_14 : f32 to vector<4x8x8x1xf32>
    %40 = arith.mulf %38, %39 : vector<4x8x8x1xf32>
    %41 = arith.mulf %35, %35 : vector<4x8x8x1xf32>
    %42 = arith.subf %40, %41 : vector<4x8x8x1xf32>
    %cst_15 = arith.constant 0.000000e+00 : f32
    %43 = vector.broadcast %cst_15 : f32 to vector<4x8x8x1xf32>
    %44 = arith.maximumf %42, %43 : vector<4x8x8x1xf32>
    %45 = vector.broadcast %35 : vector<4x8x8x1xf32> to vector<4x8x8x128xf32>
    %46 = arith.subf %31, %45 : vector<4x8x8x128xf32>
    %cst_16 = arith.constant 9.99999974E-6 : f32
    %47 = vector.broadcast %cst_16 : f32 to vector<4x8x8x1xf32>
    %48 = arith.addf %44, %47 : vector<4x8x8x1xf32>
    %49 = math.rsqrt %48 : vector<4x8x8x1xf32>
    %50 = vector.broadcast %49 : vector<4x8x8x1xf32> to vector<4x8x8x128xf32>
    %51 = arith.mulf %46, %50 : vector<4x8x8x128xf32>
    %52 = vector.broadcast %19 : vector<1x1x1x128xf32> to vector<4x8x8x128xf32>
    %53 = arith.mulf %51, %52 : vector<4x8x8x128xf32>
    %54 = vector.broadcast %21 : vector<1x1x1x128xf32> to vector<4x8x8x128xf32>
    %55 = arith.addf %53, %54 : vector<4x8x8x128xf32>
    %56 = vector.shape_cast %1 : vector<4x64x128xf32> to vector<4x8x8x128xf32>
    %cst_17 = arith.constant 0.000000e+00 : f32
    %57 = vector.broadcast %cst_17 : f32 to vector<4x8x8x128xf32>
    %58 = arith.maximumf %55, %57 : vector<4x8x8x128xf32>
    %59 = arith.addf %56, %58 : vector<4x8x8x128xf32>
    %60 = vector.shape_cast %59 : vector<4x8x8x128xf32> to vector<4x64x128xf32>
    %c0_18 = arith.constant 0 : index
    %c0_19 = arith.constant 0 : index
    %c0_20 = arith.constant 0 : index
    %61 = vector.load %arg6[%c0_18, %c0_19, %c0_20] : memref<4x64x128xf32, #tpu.memory_space<vmem>>, vector<4x64x128xf32>
    tpu.vector_store %arg6[%c0_18, %c0_19, %c0_20], %60 {strides = array<i32>} : memref<4x64x128xf32, #tpu.memory_space<vmem>>, vector<4x64x128xf32>,
    %cst_21 = arith.constant 0.000000e+00 : f32
    %62 = vector.broadcast %cst_21 : f32 to vector<4x8x8x128xf32>
    %63 = arith.subf %62, %59 : vector<4x8x8x128xf32>
    %64 = math.exp %63 : vector<4x8x8x128xf32>
    %cst_22 = arith.constant 1.000000e+00 : f32
    %65 = vector.broadcast %cst_22 : f32 to vector<4x8x8x128xf32>
    %66 = arith.addf %65, %64 : vector<4x8x8x128xf32>
    %cst_23 = arith.constant 1.000000e+00 : f32
    %67 = vector.broadcast %cst_23 : f32 to vector<4x8x8x128xf32>
    %68 = arith.divf %67, %66 : vector<4x8x8x128xf32>
    %69 = math.exp %68 : vector<4x8x8x128xf32>
    %70 = vector.shape_cast %12 : vector<4x8x128xf32> to vector<4x1x8x128xf32>
    %71 = vector.broadcast %70 : vector<4x1x8x128xf32> to vector<4x8x8x128xf32>
    %72 = arith.mulf %69, %71 : vector<4x8x8x128xf32>
    %cst_24 = arith.constant dense<0.000000e+00> : vector<4x8x128xf32>
    %73 = vector.multi_reduction <add>, %72, %cst_24 [2] : vector<4x8x8x128xf32> to vector<4x8x128xf32>
    %cst_25 = arith.constant dense<0.000000e+00> : vector<4x8x128xf32>
    %74 = vector.multi_reduction <add>, %69, %cst_25 [2] : vector<4x8x8x128xf32> to vector<4x8x128xf32>
    %75 = tpu.reciprocal %74 {approx = true} : vector<4x8x128xf32> -> vector<4x8x128xf32>
    %76 = arith.mulf %73, %75 : vector<4x8x128xf32>
    %cst_26 = arith.constant 1.250000e-01 : f32
    %77 = vector.broadcast %cst_26 : f32 to vector<4x8x128xf32>
    %78 = arith.mulf %76, %77 : vector<4x8x128xf32>
    %79 = arith.addf %10, %78 : vector<4x8x128xf32>
    %cst_27 = arith.constant dense<0.000000e+00> : vector<4x8xf32>
    %80 = vector.multi_reduction <add>, %79, %cst_27 [2] : vector<4x8x128xf32> to vector<4x8xf32>
    %81 = vector.shape_cast %80 : vector<4x8xf32> to vector<4x8x1xf32>
    %cst_28 = arith.constant 3.125000e-02 : f32
    %82 = vector.broadcast %cst_28 : f32 to vector<4x8x1xf32>
    %83 = arith.mulf %81, %82 : vector<4x8x1xf32>
    %84 = arith.mulf %79, %79 : vector<4x8x128xf32>
    %cst_29 = arith.constant dense<0.000000e+00> : vector<4x8xf32>
    %85 = vector.multi_reduction <add>, %84, %cst_29 [2] : vector<4x8x128xf32> to vector<4x8xf32>
    %86 = vector.shape_cast %85 : vector<4x8xf32> to vector<4x8x1xf32>
    %cst_30 = arith.constant 3.125000e-02 : f32
    %87 = vector.broadcast %cst_30 : f32 to vector<4x8x1xf32>
    %88 = arith.mulf %86, %87 : vector<4x8x1xf32>
    %89 = arith.mulf %83, %83 : vector<4x8x1xf32>
    %90 = arith.subf %88, %89 : vector<4x8x1xf32>
    %cst_31 = arith.constant 0.000000e+00 : f32
    %91 = vector.broadcast %cst_31 : f32 to vector<4x8x1xf32>
    %92 = arith.maximumf %90, %91 : vector<4x8x1xf32>
    %93 = vector.broadcast %83 : vector<4x8x1xf32> to vector<4x8x128xf32>
    %94 = arith.subf %79, %93 : vector<4x8x128xf32>
    %cst_32 = arith.constant 9.99999974E-6 : f32
    %95 = vector.broadcast %cst_32 : f32 to vector<4x8x1xf32>
    %96 = arith.addf %92, %95 : vector<4x8x1xf32>
    %97 = math.rsqrt %96 : vector<4x8x1xf32>
    %98 = vector.broadcast %97 : vector<4x8x1xf32> to vector<4x8x128xf32>
    %99 = arith.mulf %94, %98 : vector<4x8x128xf32>
    %100 = vector.broadcast %23 : vector<1x1x128xf32> to vector<4x8x128xf32>
    %101 = arith.mulf %99, %100 : vector<4x8x128xf32>
    %102 = vector.broadcast %25 : vector<1x1x128xf32> to vector<4x8x128xf32>
    %103 = arith.addf %101, %102 : vector<4x8x128xf32>
    %104 = arith.addf %0, %103 : vector<4x8x128xf32>
    %cst_33 = arith.constant 0.000000e+00 : f32
    %105 = vector.broadcast %cst_33 : f32 to vector<4x8x128xf32>
    %106 = arith.maximumf %104, %105 : vector<4x8x128xf32>
    %c0_34 = arith.constant 0 : index
    %c0_35 = arith.constant 0 : index
    %c0_36 = arith.constant 0 : index
    %107 = vector.load %arg5[%c0_34, %c0_35, %c0_36] : memref<4x8x128xf32, #tpu.memory_space<vmem>>, vector<4x8x128xf32>
    tpu.vector_store %arg5[%c0_34, %c0_35, %c0_36], %106 {strides = array<i32>} : memref<4x8x128xf32, #tpu.memory_space<vmem>>, vector<4x8x128xf32>,
    return
  }
  func.func @transform_0(%arg0: i32) -> (i32, i32, i32) {
    %c0_i32 = arith.constant 0 : i32
    %c0_i32_0 = arith.constant 0 : i32
    %c0_i32_1 = arith.constant 0 : i32
    return %arg0, %c0_i32, %c0_i32_0 : i32, i32, i32
  }
  func.func @transform_1(%arg0: i32) -> (i32, i32, i32) {
    %c0_i32 = arith.constant 0 : i32
    %c0_i32_0 = arith.constant 0 : i32
    %c0_i32_1 = arith.constant 0 : i32
    return %arg0, %c0_i32, %c0_i32_0 : i32, i32, i32
  }
  func.func @transform_2(%arg0: i32) -> (i32, i32) {
    %c0_i32 = arith.constant 0 : i32
    %c0_i32_0 = arith.constant 0 : i32
    %c0_i32_1 = arith.constant 0 : i32
    return %c0_i32, %c0_i32_0 : i32, i32
  }
  func.func @transform_3(%arg0: i32) -> (i32, i32) {
    %c0_i32 = arith.constant 0 : i32
    %c0_i32_0 = arith.constant 0 : i32
    %c0_i32_1 = arith.constant 0 : i32
    return %c0_i32, %c0_i32_0 : i32, i32
  }
  func.func @transform_4(%arg0: i32) -> (i32, i32, i32) {
    %c0_i32 = arith.constant 0 : i32
    %c0_i32_0 = arith.constant 0 : i32
    %c0_i32_1 = arith.constant 0 : i32
    return %arg0, %c0_i32, %c0_i32_0 : i32, i32, i32
  }
  func.func @transform_5(%arg0: i32) -> (i32, i32, i32) {
    %c0_i32 = arith.constant 0 : i32
    %c0_i32_0 = arith.constant 0 : i32
    %c0_i32_1 = arith.constant 0 : i32
    return %arg0, %c0_i32, %c0_i32_0 : i32, i32, i32
  }
}

</mosaic_0001>

<llo_original>
// kernel: gnn_edge_1layer.1
$region0: #{gnn_edge_1layer.1}
  #allocation0 [shape = 'u32[]', space=smem, size = 0x4, offset = 0x4, fixed_abs, tag = 'smem constant byte address 0x4 - core index']
  #allocation1 [shape = 'u32[144,128]{1,0:T(1,128)}', space=vmem, size = 0x12000, scoped, tag = 'internal scratch']
  %s0 = inlined_call_operand.vmem [shape: f32[4,8,128], index: 0, kind: input, shape index: {}]
  %s1 = inlined_call_operand.vmem [shape: f32[4,64,128], index: 1, kind: input, shape index: {}]
  %s2 = inlined_call_operand.vmem [shape: f32[128,640], index: 2, kind: input, shape index: {}]
  %s3 = inlined_call_operand.vmem [shape: f32[4,128], index: 3, kind: input, shape index: {}]
  %s4 = inlined_call_operand.hbm [shape: f32[4,8,128], index: 4, kind: output, shape index: {0}]
  %s5 = inlined_call_operand.vmem [shape: f32[4,64,128], index: 5, kind: output, shape index: {1}]
  %6 = xla_tuple %s4, %s5
  %s7 = sld [smem:[#allocation0]]
  $region34: #{gnn_edge_1layer.1} parent=0
    _
  %s9 = ssub.s32 1, %s7
  %s10 = scalar_select 0, %s9, %s7
  $region1: #{gnn_edge_1layer.1} parent=0
    #allocation2 [shape = 'u8[16384]{0}', space=vmem, size = 0x4000, scoped, tag = 'output window, operand 0, single buffered']
    #allocation3 [shape = 's32[1]{0}', space=sflag, size = 0x4, scoped, tag = 'scoped memory for gnn_edge_1layer.1']
    %11 = vsyncpa [#allocation3], 0
    // Predicated region
    $region2: #{gnn_edge_1layer.1} parent=1 // pred_check
      _
    $region3: #{gnn_edge_1layer.1} parent=1 // pred_check_branch
      %13 = sbr.rel (0) target = $region5
    $region4: #{gnn_edge_1layer.1} parent=1 // pred_region
      _
    $region5: #{gnn_edge_1layer.1} parent=1 // pred_fallthru
      _
    // Predicated region
    $region6: #{gnn_edge_1layer.1} parent=1 // pred_check
      _
    $region7: #{gnn_edge_1layer.1} parent=1 // pred_check_branch
      %15 = sbr.rel (0) target = $region9
    $region8: #{gnn_edge_1layer.1} parent=1 // pred_region
      _
    $region9: #{gnn_edge_1layer.1} parent=1 // pred_fallthru
      _
    // Predicated region
    $region10: #{gnn_edge_1layer.1} parent=1 // pred_check
      _
    $region11: #{gnn_edge_1layer.1} parent=1 // pred_check_branch
      %17 = sbr.rel (0) target = $region13
    $region12: #{gnn_edge_1layer.1} parent=1 // pred_region
      _
    $region13: #{gnn_edge_1layer.1} parent=1 // pred_fallthru
      _
    // Predicated region
    $region14: #{gnn_edge_1layer.1} parent=1 // pred_check
      _
    $region15: #{gnn_edge_1layer.1} parent=1 // pred_check_branch
      %19 = sbr.rel (0) target = $region17
    $region16: #{gnn_edge_1layer.1} parent=1 // pred_region
      _
    $region17: #{gnn_edge_1layer.1} parent=1 // pred_fallthru
      _
    %v20 = vld [vmem:[%s0] sm:$0xff]
    %v21 = vld [vmem:[%s0 + $0x8] sm:$0xff]
    %v22 = vld [vmem:[%s0 + $0x10] sm:$0xff]
    %v23 = vld [vmem:[%s0 + $0x18] sm:$0xff]
    %v24 = vld [vmem:[%s1] sm:$0xff]
    %v25 = vld [vmem:[%s1 + $0x8] sm:$0xff]
    %v26 = vld [vmem:[%s1 + $0x10] sm:$0xff]
    %v27 = vld [vmem:[%s1 + $0x18] sm:$0xff]
    %v28 = vld [vmem:[%s1 + $0x20] sm:$0xff]
    %v29 = vld [vmem:[%s1 + $0x28] sm:$0xff]
    %v30 = vld [vmem:[%s1 + $0x30] sm:$0xff]
    %v31 = vld [vmem:[%s1 + $0x38] sm:$0xff]
    %v32 = vld [vmem:[%s1 + $0x40] sm:$0xff]
    %v33 = vld [vmem:[%s1 + $0x48] sm:$0xff]
    %v34 = vld [vmem:[%s1 + $0x50] sm:$0xff]
    %v35 = vld [vmem:[%s1 + $0x58] sm:$0xff]
    %v36 = vld [vmem:[%s1 + $0x60] sm:$0xff]
    %v37 = vld [vmem:[%s1 + $0x68] sm:$0xff]
    %v38 = vld [vmem:[%s1 + $0x70] sm:$0xff]
    %v39 = vld [vmem:[%s1 + $0x78] sm:$0xff]
    %v40 = vld [vmem:[%s1 + $0x80] sm:$0xff]
    %v41 = vld [vmem:[%s1 + $0x88] sm:$0xff]
    %v42 = vld [vmem:[%s1 + $0x90] sm:$0xff]
    %v43 = vld [vmem:[%s1 + $0x98] sm:$0xff]
    %v44 = vld [vmem:[%s1 + $0xa0] sm:$0xff]
    %v45 = vld [vmem:[%s1 + $0xa8] sm:$0xff]
    %v46 = vld [vmem:[%s1 + $0xb0] sm:$0xff]
    %v47 = vld [vmem:[%s1 + $0xb8] sm:$0xff]
    %v48 = vld [vmem:[%s1 + $0xc0] sm:$0xff]
    %v49 = vld [vmem:[%s1 + $0xc8] sm:$0xff]
    %v50 = vld [vmem:[%s1 + $0xd0] sm:$0xff]
    %v51 = vld [vmem:[%s1 + $0xd8] sm:$0xff]
    %v52 = vld [vmem:[%s1 + $0xe0] sm:$0xff]
    %v53 = vld [vmem:[%s1 + $0xe8] sm:$0xff]
    %v54 = vld [vmem:[%s1 + $0xf0] sm:$0xff]
    %v55 = vld [vmem:[%s1 + $0xf8] sm:$0xff]
    %v56 = vld [vmem:[%s2] sm:$0xff]
    %v57 = vld [vmem:[%s2 + $0x8] sm:$0xff]
    %v58 = vld [vmem:[%s2 + $0x10] sm:$0xff]
    %v59 = vld [vmem:[%s2 + $0x18] sm:$0xff]
    %v60 = vld [vmem:[%s2 + $0x28] sm:$0xff]
    %v61 = vld [vmem:[%s2 + $0x30] sm:$0xff]
    %v62 = vld [vmem:[%s2 + $0x38] sm:$0xff]
    %v63 = vld [vmem:[%s2 + $0x40] sm:$0xff]
    %v64 = vld [vmem:[%s2 + $0x50] sm:$0xff]
    %v65 = vld [vmem:[%s2 + $0x58] sm:$0xff]
    %v66 = vld [vmem:[%s2 + $0x60] sm:$0xff]
    %v67 = vld [vmem:[%s2 + $0x68] sm:$0xff]
    %v68 = vld [vmem:[%s2 + $0x78] sm:$0xff]
    %v69 = vld [vmem:[%s2 + $0x80] sm:$0xff]
    %v70 = vld [vmem:[%s2 + $0x88] sm:$0xff]
    %v71 = vld [vmem:[%s2 + $0x90] sm:$0xff]
    %v72 = vld [vmem:[%s2 + $0xa0] sm:$0xff]
    %v73 = vld [vmem:[%s2 + $0xa8] sm:$0xff]
    %v74 = vld [vmem:[%s2 + $0xb0] sm:$0xff]
    %v75 = vld [vmem:[%s2 + $0xb8] sm:$0xff]
    %v76 = vld [vmem:[%s2 + $0xc8] sm:$0xff]
    %v77 = vld [vmem:[%s2 + $0xd0] sm:$0xff]
    %v78 = vld [vmem:[%s2 + $0xd8] sm:$0xff]
    %v79 = vld [vmem:[%s2 + $0xe0] sm:$0xff]
    %v80 = vld [vmem:[%s2 + $0xf0] sm:$0xff]
    %v81 = vld [vmem:[%s2 + $0xf8] sm:$0xff]
    %v82 = vld [vmem:[%s2 + $0x100] sm:$0xff]
    %v83 = vld [vmem:[%s2 + $0x108] sm:$0xff]
    %v84 = vld [vmem:[%s2 + $0x118] sm:$0xff]
    %v85 = vld [vmem:[%s2 + $0x120] sm:$0xff]
    %v86 = vld [vmem:[%s2 + $0x128] sm:$0xff]
    %v87 = vld [vmem:[%s2 + $0x130] sm:$0xff]
    %v88 = vld [vmem:[%s2 + $0x140] sm:$0xff]
    %v89 = vld [vmem:[%s2 + $0x148] sm:$0xff]
    %v90 = vld [vmem:[%s2 + $0x150] sm:$0xff]
    %v91 = vld [vmem:[%s2 + $0x158] sm:$0xff]
    %v92 = vld [vmem:[%s2 + $0x168] sm:$0xff]
    %v93 = vld [vmem:[%s2 + $0x170] sm:$0xff]
    %v94 = vld [vmem:[%s2 + $0x178] sm:$0xff]
    %v95 = vld [vmem:[%s2 + $0x180] sm:$0xff]
    %v96 = vld [vmem:[%s2 + $0x190] sm:$0xff]
    %v97 = vld [vmem:[%s2 + $0x198] sm:$0xff]
    %v98 = vld [vmem:[%s2 + $0x1a0] sm:$0xff]
    %v99 = vld [vmem:[%s2 + $0x1a8] sm:$0xff]
    %v100 = vld [vmem:[%s2 + $0x1b8] sm:$0xff]
    %v101 = vld [vmem:[%s2 + $0x1c0] sm:$0xff]
    %v102 = vld [vmem:[%s2 + $0x1c8] sm:$0xff]
    %v103 = vld [vmem:[%s2 + $0x1d0] sm:$0xff]
    %v104 = vld [vmem:[%s2 + $0x1e0] sm:$0xff]
    %v105 = vld [vmem:[%s2 + $0x1e8] sm:$0xff]
    %v106 = vld [vmem:[%s2 + $0x1f0] sm:$0xff]
    %v107 = vld [vmem:[%s2 + $0x1f8] sm:$0xff]
    %v108 = vld [vmem:[%s2 + $0x208] sm:$0xff]
    %v109 = vld [vmem:[%s2 + $0x210] sm:$0xff]
    %v110 = vld [vmem:[%s2 + $0x218] sm:$0xff]
    %v111 = vld [vmem:[%s2 + $0x220] sm:$0xff]
    %v112 = vld [vmem:[%s2 + $0x230] sm:$0xff]
    %v113 = vld [vmem:[%s2 + $0x238] sm:$0xff]
    %v114 = vld [vmem:[%s2 + $0x240] sm:$0xff]
    %v115 = vld [vmem:[%s2 + $0x248] sm:$0xff]
    %v116 = vld [vmem:[%s2 + $0x258] sm:$0xff]
    %v117 = vld [vmem:[%s2 + $0x260] sm:$0xff]
    %v118 = vld [vmem:[%s2 + $0x268] sm:$0xff]
    %v119 = vld [vmem:[%s2 + $0x270] sm:$0xff]
    %120 = vmatprep.subr.mxu0 %v57
    %121 = vmatpush1.msra.mxu0 %v56
    %122 = vmatprep.subr.mxu0 %v61
    %123 = vmatpush1.msra.mxu0 %v60
    %124 = vmatprep.subr.mxu0 %v65
    %125 = vmatpush1.msra.mxu0 %v64
    %126 = vmatprep.subr.mxu0 %v69
    %127 = vmatpush1.msra.mxu0 %v68
    %128 = vmatprep.subr.mxu0 %v73
    %129 = vmatpush1.msra.mxu0 %v72
    %130 = vmatprep.subr.mxu0 %v77
    %131 = vmatpush1.msra.mxu0 %v76
    %132 = vmatprep.subr.mxu0 %v81
    %133 = vmatpush1.msra.mxu0 %v80
    %134 = vmatprep.subr.mxu0 %v85
    %135 = vmatpush1.msra.mxu0 %v84
    %136 = vmatprep.subr.mxu0 %v89
    %137 = vmatpush1.msra.mxu0 %v88
    %138 = vmatprep.subr.mxu0 %v93
    %139 = vmatpush1.msra.mxu0 %v92
    %140 = vmatprep.subr.mxu0 %v97
    %141 = vmatpush1.msra.mxu0 %v96
    %142 = vmatprep.subr.mxu0 %v101
    %143 = vmatpush1.msra.mxu0 %v100
    %144 = vmatprep.subr.mxu0 %v105
    %145 = vmatpush1.msra.mxu0 %v104
    %146 = vmatprep.subr.mxu0 %v109
    %147 = vmatpush1.msra.mxu0 %v108
    %148 = vmatprep.subr.mxu0 %v113
    %149 = vmatpush1.msra.mxu0 %v112
    %150 = vmatprep.subr.mxu0 %v117
    %151 = vmatpush1.msra.mxu0 %v116
    %152 = vmatprep.subr.mxu0 0.0
    %153 = vmatpush1.msra.mxu0 0.0
    %154 = vmatprep.subr.mxu0 0.0
    %155 = vmatpush1.msra.mxu0 0.0
    %156 = vmatprep.subr.mxu0 0.0
    %157 = vmatpush1.msra.mxu0 0.0
    %158 = vmatprep.subr.mxu0 0.0
    %159 = vmatpush1.msra.mxu0 0.0
    %160 = vmatprep.subr.mxu0 0.0
    %161 = vmatpush1.msra.mxu0 0.0
    %162 = vmatprep.subr.mxu0 0.0
    %163 = vmatpush1.msra.mxu0 0.0
    %164 = vmatprep.subr.mxu0 0.0
    %165 = vmatpush1.msra.mxu0 0.0
    %166 = vmatprep.subr.mxu0 0.0
    %167 = vmatpush1.msra.mxu0 0.0
    %168 = vmatprep.subr.mxu0 0.0
    %169 = vmatpush1.msra.mxu0 0.0
    %170 = vmatprep.subr.mxu0 0.0
    %171 = vmatpush1.msra.mxu0 0.0
    %172 = vmatprep.subr.mxu0 0.0
    %173 = vmatpush1.msra.mxu0 0.0
    %174 = vmatprep.subr.mxu0 0.0
    %175 = vmatpush1.msra.mxu0 0.0
    %176 = vmatprep.subr.mxu0 0.0
    %177 = vmatpush1.msra.mxu0 0.0
    %178 = vmatprep.subr.mxu0 0.0
    %179 = vmatpush1.msra.mxu0 0.0
    %180 = vmatprep.subr.mxu0 0.0
    %181 = vmatpush1.msra.mxu0 0.0
    %182 = vmatprep.subr.mxu0 0.0
    %183 = vmatpush1.msra.mxu0 0.0
    %184 = vmatprep.mubr.f32.mxu0 0.0
    %185 = vmatmul.mubr.f32.gmra.mrb[0].mxu0 %v20
    %v186 = vpop.f32.mrb[0].mxu0
    %v187 = vadd.f32 0.0, %v186
    %v188 = vpop.f32.mrb[0].mxu0
    %v189 = vadd.f32 0.0, %v188
    %190 = vmatprep.mubr.f32.mxu0 0.0
    %191 = vmatmul.mubr.f32.gmra.mrb[0].mxu0 %v21
    %v192 = vpop.f32.mrb[0].mxu0
    %v193 = vadd.f32 0.0, %v192
    %v194 = vpop.f32.mrb[0].mxu0
    %v195 = vadd.f32 0.0, %v194
    %196 = vmatprep.mubr.f32.mxu0 0.0
    %197 = vmatmul.mubr.f32.gmra.mrb[0].mxu0 %v22
    %v198 = vpop.f32.mrb[0].mxu0
    %v199 = vadd.f32 0.0, %v198
    %v200 = vpop.f32.mrb[0].mxu0
    %v201 = vadd.f32 0.0, %v200
    %202 = vmatprep.mubr.f32.mxu0 0.0
    %203 = vmatmul.mubr.f32.gmra.mrb[0].mxu0 %v23
    %v204 = vpop.f32.mrb[0].mxu0
    %v205 = vadd.f32 0.0, %v204
    %v206 = vpop.f32.mrb[0].mxu0
    %v207 = vadd.f32 0.0, %v206
    %208 = vdwg.mxu0
    %209 = vmatprep.subr.mxu0 %v59
    %210 = vmatpush1.msra.mxu0 %v58
    %211 = vmatprep.subr.mxu0 %v63
    %212 = vmatpush1.msra.mxu0 %v62
    %213 = vmatprep.subr.mxu0 %v67
    %214 = vmatpush1.msra.mxu0 %v66
    %215 = vmatprep.subr.mxu0 %v71
    %216 = vmatpush1.msra.mxu0 %v70
    %217 = vmatprep.subr.mxu0 %v75
    %218 = vmatpush1.msra.mxu0 %v74
    %219 = vmatprep.subr.mxu0 %v79
    %220 = vmatpush1.msra.mxu0 %v78
    %221 = vmatprep.subr.mxu0 %v83
    %222 = vmatpush1.msra.mxu0 %v82
    %223 = vmatprep.subr.mxu0 %v87
    %224 = vmatpush1.msra.mxu0 %v86
    %225 = vmatprep.subr.mxu0 %v91
    %226 = vmatpush1.msra.mxu0 %v90
    %227 = vmatprep.subr.mxu0 %v95
    %228 = vmatpush1.msra.mxu0 %v94
    %229 = vmatprep.subr.mxu0 %v99
    %230 = vmatpush1.msra.mxu0 %v98
    %231 = vmatprep.subr.mxu0 %v103
    %232 = vmatpush1.msra.mxu0 %v102
    %233 = vmatprep.subr.mxu0 %v107
    %234 = vmatpush1.msra.mxu0 %v106
    %235 = vmatprep.subr.mxu0 %v111
    %236 = vmatpush1.msra.mxu0 %v110
    %237 = vmatprep.subr.mxu0 %v115
    %238 = vmatpush1.msra.mxu0 %v114
    %239 = vmatprep.subr.mxu0 %v119
    %240 = vmatpush1.msra.mxu0 %v118
    %241 = vmatprep.subr.mxu0 0.0
    %242 = vmatpush1.msra.mxu0 0.0
    %243 = vmatprep.subr.mxu0 0.0
    %244 = vmatpush1.msra.mxu0 0.0
    %245 = vmatprep.subr.mxu0 0.0
    %246 = vmatpush1.msra.mxu0 0.0
    %247 = vmatprep.subr.mxu0 0.0
    %248 = vmatpush1.msra.mxu0 0.0
    %249 = vmatprep.subr.mxu0 0.0
    %250 = vmatpush1.msra.mxu0 0.0
    %251 = vmatprep.subr.mxu0 0.0
    %252 = vmatpush1.msra.mxu0 0.0
    %253 = vmatprep.subr.mxu0 0.0
    %254 = vmatpush1.msra.mxu0 0.0
    %255 = vmatprep.subr.mxu0 0.0
    %256 = vmatpush1.msra.mxu0 0.0
    %257 = vmatprep.subr.mxu0 0.0
    %258 = vmatpush1.msra.mxu0 0.0
    %259 = vmatprep.subr.mxu0 0.0
    %260 = vmatpush1.msra.mxu0 0.0
    %261 = vmatprep.subr.mxu0 0.0
    %262 = vmatpush1.msra.mxu0 0.0
    %263 = vmatprep.subr.mxu0 0.0
    %264 = vmatpush1.msra.mxu0 0.0
    %265 = vmatprep.subr.mxu0 0.0
    %266 = vmatpush1.msra.mxu0 0.0
    %267 = vmatprep.subr.mxu0 0.0
    %268 = vmatpush1.msra.mxu0 0.0
    %269 = vmatprep.subr.mxu0 0.0
    %270 = vmatpush1.msra.mxu0 0.0
    %271 = vmatprep.subr.mxu0 0.0
    %272 = vmatpush1.msra.mxu0 0.0
    %273 = vmatprep.mubr.f32.mxu0 0.0
    %274 = vmatmul.mubr.f32.gmra.mrb[0].mxu0 %v20
    %v275 = vpop.f32.mrb[0].mxu0
    %v276 = vadd.f32 0.0, %v275
    %v277 = vpop.f32.mrb[0].mxu0
    %v278 = vadd.f32 0.0, %v277
    %279 = vmatprep.mubr.f32.mxu0 0.0
    %280 = vmatmul.mubr.f32.gmra.mrb[0].mxu0 %v21
    %v281 = vpop.f32.mrb[0].mxu0
    %v282 = vadd.f32 0.0, %v281
    %v283 = vpop.f32.mrb[0].mxu0
    %v284 = vadd.f32 0.0, %v283
    %285 = vmatprep.mubr.f32.mxu0 0.0
    %286 = vmatmul.mubr.f32.gmra.mrb[0].mxu0 %v22
    %v287 = vpop.f32.mrb[0].mxu0
    %v288 = vadd.f32 0.0, %v287
    %v289 = vpop.f32.mrb[0].mxu0
    %v290 = vadd.f32 0.0, %v289
    %291 = vmatprep.mubr.f32.mxu0 0.0
    %292 = vmatmul.mubr.f32.gmra.mrb[0].mxu0 %v23
    %v293 = vpop.f32.mrb[0].mxu0
    %v294 = vadd.f32 0.0, %v293
    %v295 = vpop.f32.mrb[0].mxu0
    %v296 = vadd.f32 0.0, %v295
    %297 = vdwg.mxu0
    %v298 = vld [vmem:[%s2 + $0x20] sm:$0xff]
    %v299 = vld [vmem:[%s2 + $0x48] sm:$0xff]
    %v300 = vld [vmem:[%s2 + $0x70] sm:$0xff]
    %v301 = vld [vmem:[%s2 + $0x98] sm:$0xff]
    %v302 = vld [vmem:[%s2 + $0xc0] sm:$0xff]
    %v303 = vld [vmem:[%s2 + $0xe8] sm:$0xff]
    %v304 = vld [vmem:[%s2 + $0x110] sm:$0xff]
    %v305 = vld [vmem:[%s2 + $0x138] sm:$0xff]
    %v306 = vld [vmem:[%s2 + $0x160] sm:$0xff]
    %v307 = vld [vmem:[%s2 + $0x188] sm:$0xff]
    %v308 = vld [vmem:[%s2 + $0x1b0] sm:$0xff]
    %v309 = vld [vmem:[%s2 + $0x1d8] sm:$0xff]
    %v310 = vld [vmem:[%s2 + $0x200] sm:$0xff]
    %v311 = vld [vmem:[%s2 + $0x228] sm:$0xff]
    %v312 = vld [vmem:[%s2 + $0x250] sm:$0xff]
    %v313 = vld [vmem:[%s2 + $0x278] sm:$0xff]
    %314 = vmatprep.subr.mxu0 0.0
    %315 = vmatpush1.msra.mxu0 %v298
    %316 = vmatprep.subr.mxu0 0.0
    %317 = vmatpush1.msra.mxu0 %v299
    %318 = vmatprep.subr.mxu0 0.0
    %319 = vmatpush1.msra.mxu0 %v300
    %320 = vmatprep.subr.mxu0 0.0
    %321 = vmatpush1.msra.mxu0 %v301
    %322 = vmatprep.subr.mxu0 0.0
    %323 = vmatpush1.msra.mxu0 %v302
    %324 = vmatprep.subr.mxu0 0.0
    %325 = vmatpush1.msra.mxu0 %v303
    %326 = vmatprep.subr.mxu0 0.0
    %327 = vmatpush1.msra.mxu0 %v304
    %328 = vmatprep.subr.mxu0 0.0
    %329 = vmatpush1.msra.mxu0 %v305
    %330 = vmatprep.subr.mxu0 0.0
    %331 = vmatpush1.msra.mxu0 %v306
    %332 = vmatprep.subr.mxu0 0.0
    %333 = vmatpush1.msra.mxu0 %v307
    %334 = vmatprep.subr.mxu0 0.0
    %335 = vmatpush1.msra.mxu0 %v308
    %336 = vmatprep.subr.mxu0 0.0
    %337 = vmatpush1.msra.mxu0 %v309
    %338 = vmatprep.subr.mxu0 0.0
    %339 = vmatpush1.msra.mxu0 %v310
    %340 = vmatprep.subr.mxu0 0.0
    %341 = vmatpush1.msra.mxu0 %v311
    %342 = vmatprep.subr.mxu0 0.0
    %343 = vmatpush1.msra.mxu0 %v312
    %344 = vmatprep.subr.mxu0 0.0
    %345 = vmatpush1.msra.mxu0 %v313
    %346 = vmatprep.subr.mxu0 0.0
    %347 = vmatpush1.msra.mxu0 0.0
    %348 = vmatprep.subr.mxu0 0.0
    %349 = vmatpush1.msra.mxu0 0.0
    %350 = vmatprep.subr.mxu0 0.0
    %351 = vmatpush1.msra.mxu0 0.0
    %352 = vmatprep.subr.mxu0 0.0
    %353 = vmatpush1.msra.mxu0 0.0
    %354 = vmatprep.subr.mxu0 0.0
    %355 = vmatpush1.msra.mxu0 0.0
    %356 = vmatprep.subr.mxu0 0.0
    %357 = vmatpush1.msra.mxu0 0.0
    %358 = vmatprep.subr.mxu0 0.0
    %359 = vmatpush1.msra.mxu0 0.0
    %360 = vmatprep.subr.mxu0 0.0
    %361 = vmatpush1.msra.mxu0 0.0
    %362 = vmatprep.subr.mxu0 0.0
    %363 = vmatpush1.msra.mxu0 0.0
    %364 = vmatprep.subr.mxu0 0.0
    %365 = vmatpush1.msra.mxu0 0.0
    %366 = vmatprep.subr.mxu0 0.0
    %367 = vmatpush1.msra.mxu0 0.0
    %368 = vmatprep.subr.mxu0 0.0
    %369 = vmatpush1.msra.mxu0 0.0
    %370 = vmatprep.subr.mxu0 0.0
    %371 = vmatpush1.msra.mxu0 0.0
    %372 = vmatprep.subr.mxu0 0.0
    %373 = vmatpush1.msra.mxu0 0.0
    %374 = vmatprep.subr.mxu0 0.0
    %375 = vmatpush1.msra.mxu0 0.0
    %376 = vmatprep.subr.mxu0 0.0
    %377 = vmatpush1.msra.mxu0 0.0
    %378 = vmatprep.mubr.f32.mxu0 0.0
    %379 = vmatmul.mubr.f32.gmra.mrb[0].mxu0 %v24
    %v380 = vpop.f32.mrb[0].mxu0
    %v381 = vadd.f32 0.0, %v380
    %v382 = vpop.f32.mrb[0].mxu0
    %383 = vmatprep.mubr.f32.mxu0 0.0
    %384 = vmatmul.mubr.f32.gmra.mrb[0].mxu0 %v25
    %v385 = vpop.f32.mrb[0].mxu0
    %v386 = vadd.f32 0.0, %v385
    %v387 = vpop.f32.mrb[0].mxu0
    %388 = vmatprep.mubr.f32.mxu0 0.0
    %389 = vmatmul.mubr.f32.gmra.mrb[0].mxu0 %v26
    %v390 = vpop.f32.mrb[0].mxu0
    %v391 = vadd.f32 0.0, %v390
    %v392 = vpop.f32.mrb[0].mxu0
    %393 = vmatprep.mubr.f32.mxu0 0.0
    %394 = vmatmul.mubr.f32.gmra.mrb[0].mxu0 %v27
    %v395 = vpop.f32.mrb[0].mxu0
    %v396 = vadd.f32 0.0, %v395
    %v397 = vpop.f32.mrb[0].mxu0
    %398 = vmatprep.mubr.f32.mxu0 0.0
    %399 = vmatmul.mubr.f32.gmra.mrb[0].mxu0 %v28
    %v400 = vpop.f32.mrb[0].mxu0
    %v401 = vadd.f32 0.0, %v400
    %v402 = vpop.f32.mrb[0].mxu0
    %403 = vmatprep.mubr.f32.mxu0 0.0
    %404 = vmatmul.mubr.f32.gmra.mrb[0].mxu0 %v29
    %v405 = vpop.f32.mrb[0].mxu0
    %v406 = vadd.f32 0.0, %v405
    %v407 = vpop.f32.mrb[0].mxu0
    %408 = vmatprep.mubr.f32.mxu0 0.0
    %409 = vmatmul.mubr.f32.gmra.mrb[0].mxu0 %v30
    %v410 = vpop.f32.mrb[0].mxu0
    %v411 = vadd.f32 0.0, %v410
    %v412 = vpop.f32.mrb[0].mxu0
    %413 = vmatprep.mubr.f32.mxu0 0.0
    %414 = vmatmul.mubr.f32.gmra.mrb[0].mxu0 %v31
    %v415 = vpop.f32.mrb[0].mxu0
    %v416 = vadd.f32 0.0, %v415
    %v417 = vpop.f32.mrb[0].mxu0
    %418 = vmatprep.mubr.f32.mxu0 0.0
    %419 = vmatmul.mubr.f32.gmra.mrb[0].mxu0 %v32
    %v420 = vpop.f32.mrb[0].mxu0
    %v421 = vadd.f32 0.0, %v420
    %v422 = vpop.f32.mrb[0].mxu0
    %423 = vmatprep.mubr.f32.mxu0 0.0
    %424 = vmatmul.mubr.f32.gmra.mrb[0].mxu0 %v33
    %v425 = vpop.f32.mrb[0].mxu0
    %v426 = vadd.f32 0.0, %v425
    %v427 = vpop.f32.mrb[0].mxu0
    %428 = vmatprep.mubr.f32.mxu0 0.0
    %429 = vmatmul.mubr.f32.gmra.mrb[0].mxu0 %v34
    %v430 = vpop.f32.mrb[0].mxu0
    %v431 = vadd.f32 0.0, %v430
    %v432 = vpop.f32.mrb[0].mxu0
    %433 = vmatprep.mubr.f32.mxu0 0.0
    %434 = vmatmul.mubr.f32.gmra.mrb[0].mxu0 %v35
    %v435 = vpop.f32.mrb[0].mxu0
    %v436 = vadd.f32 0.0, %v435
    %v437 = vpop.f32.mrb[0].mxu0
    %438 = vmatprep.mubr.f32.mxu0 0.0
    %439 = vmatmul.mubr.f32.gmra.mrb[0].mxu0 %v36
    %v440 = vpop.f32.mrb[0].mxu0
    %v441 = vadd.f32 0.0, %v440
    %v442 = vpop.f32.mrb[0].mxu0
    %443 = vmatprep.mubr.f32.mxu0 0.0
    %444 = vmatmul.mubr.f32.gmra.mrb[0].mxu0 %v37
    %v445 = vpop.f32.mrb[0].mxu0
    %v446 = vadd.f32 0.0, %v445
    %v447 = vpop.f32.mrb[0].mxu0
    %448 = vmatprep.mubr.f32.mxu0 0.0
    %449 = vmatmul.mubr.f32.gmra.mrb[0].mxu0 %v38
    %v450 = vpop.f32.mrb[0].mxu0
    %v451 = vadd.f32 0.0, %v450
    %v452 = vpop.f32.mrb[0].mxu0
    %453 = vmatprep.mubr.f32.mxu0 0.0
    %454 = vmatmul.mubr.f32.gmra.mrb[0].mxu0 %v39
    %v455 = vpop.f32.mrb[0].mxu0
    %v456 = vadd.f32 0.0, %v455
    %v457 = vpop.f32.mrb[0].mxu0
    %458 = vmatprep.mubr.f32.mxu0 0.0
    %459 = vmatmul.mubr.f32.gmra.mrb[0].mxu0 %v40
    %v460 = vpop.f32.mrb[0].mxu0
    %v461 = vadd.f32 0.0, %v460
    %v462 = vpop.f32.mrb[0].mxu0
    %463 = vmatprep.mubr.f32.mxu0 0.0
    %464 = vmatmul.mubr.f32.gmra.mrb[0].mxu0 %v41
    %v465 = vpop.f32.mrb[0].mxu0
    %v466 = vadd.f32 0.0, %v465
    %v467 = vpop.f32.mrb[0].mxu0
    %468 = vmatprep.mubr.f32.mxu0 0.0
    %469 = vmatmul.mubr.f32.gmra.mrb[0].mxu0 %v42
    %v470 = vpop.f32.mrb[0].mxu0
    %v471 = vadd.f32 0.0, %v470
    %v472 = vpop.f32.mrb[0].mxu0
    %473 = vmatprep.mubr.f32.mxu0 0.0
    %474 = vmatmul.mubr.f32.gmra.mrb[0].mxu0 %v43
    %v475 = vpop.f32.mrb[0].mxu0
    %v476 = vadd.f32 0.0, %v475
    %v477 = vpop.f32.mrb[0].mxu0
    %478 = vmatprep.mubr.f32.mxu0 0.0
    %479 = vmatmul.mubr.f32.gmra.mrb[0].mxu0 %v44
    %v480 = vpop.f32.mrb[0].mxu0
    %v481 = vadd.f32 0.0, %v480
    %v482 = vpop.f32.mrb[0].mxu0
    %483 = vmatprep.mubr.f32.mxu0 0.0
    %484 = vmatmul.mubr.f32.gmra.mrb[0].mxu0 %v45
    %v485 = vpop.f32.mrb[0].mxu0
    %v486 = vadd.f32 0.0, %v485
    %v487 = vpop.f32.mrb[0].mxu0
    %488 = vmatprep.mubr.f32.mxu0 0.0
    %489 = vmatmul.mubr.f32.gmra.mrb[0].mxu0 %v46
    %v490 = vpop.f32.mrb[0].mxu0
    %v491 = vadd.f32 0.0, %v490
    %v492 = vpop.f32.mrb[0].mxu0
    %493 = vmatprep.mubr.f32.mxu0 0.0
    %494 = vmatmul.mubr.f32.gmra.mrb[0].mxu0 %v47
    %v495 = vpop.f32.mrb[0].mxu0
    %v496 = vadd.f32 0.0, %v495
    %v497 = vpop.f32.mrb[0].mxu0
    %498 = vmatprep.mubr.f32.mxu0 0.0
    %499 = vmatmul.mubr.f32.gmra.mrb[0].mxu0 %v48
    %v500 = vpop.f32.mrb[0].mxu0
    %v501 = vadd.f32 0.0, %v500
    %v502 = vpop.f32.mrb[0].mxu0
    %503 = vmatprep.mubr.f32.mxu0 0.0
    %504 = vmatmul.mubr.f32.gmra.mrb[0].mxu0 %v49
    %v505 = vpop.f32.mrb[0].mxu0
    %v506 = vadd.f32 0.0, %v505
    %v507 = vpop.f32.mrb[0].mxu0
    %508 = vmatprep.mubr.f32.mxu0 0.0
    %509 = vmatmul.mubr.f32.gmra.mrb[0].mxu0 %v50
    %v510 = vpop.f32.mrb[0].mxu0
    %v511 = vadd.f32 0.0, %v510
    %v512 = vpop.f32.mrb[0].mxu0
    %513 = vmatprep.mubr.f32.mxu0 0.0
    %514 = vmatmul.mubr.f32.gmra.mrb[0].mxu0 %v51
    %v515 = vpop.f32.mrb[0].mxu0
    %v516 = vadd.f32 0.0, %v515
    %v517 = vpop.f32.mrb[0].mxu0
    %518 = vmatprep.mubr.f32.mxu0 0.0
    %519 = vmatmul.mubr.f32.gmra.mrb[0].mxu0 %v52
    %v520 = vpop.f32.mrb[0].mxu0
    %v521 = vadd.f32 0.0, %v520
    %v522 = vpop.f32.mrb[0].mxu0
    %523 = vmatprep.mubr.f32.mxu0 0.0
    %524 = vmatmul.mubr.f32.gmra.mrb[0].mxu0 %v53
    %v525 = vpop.f32.mrb[0].mxu0
    %v526 = vadd.f32 0.0, %v525
    %v527 = vpop.f32.mrb[0].mxu0
    %528 = vmatprep.mubr.f32.mxu0 0.0
    %529 = vmatmul.mubr.f32.gmra.mrb[0].mxu0 %v54
    %v530 = vpop.f32.mrb[0].mxu0
    %v531 = vadd.f32 0.0, %v530
    %v532 = vpop.f32.mrb[0].mxu0
    %533 = vmatprep.mubr.f32.mxu0 0.0
    %534 = vmatmul.mubr.f32.gmra.mrb[0].mxu0 %v55
    %v535 = vpop.f32.mrb[0].mxu0
    %v536 = vadd.f32 0.0, %v535
    %v537 = vpop.f32.mrb[0].mxu0
    %538 = vdwg.mxu0
    %v539 = vld [vmem:[%s3] sm:$0xf]
    %v544 = vcombine.high %v187, %v187
    %v546 = vunpack.c.l.s4 1966171168
    %v547 = vunpack.c.0.s8 %v546
    %v548 = vlaneseq
    %v549 = vshrl.u32 %v548, 7
    %v550 = vsub.s32 %v547, %v549
    %v551 = vrot.slane %v187, %v550
    %v553 = vunpack.c.l.s4 1966171168
    %v554 = vunpack.c.0.s8 %v553
    %v555 = vlaneseq
    %v556 = vshrl.u32 %v555, 7
    %v557 = vsub.s32 %v554, %v556
    %v558 = vrot.slane %v544, %v557
    %v559 = vcombine.high %v551, %v551
    %v560 = vcombine.high %v558, %v558
    %v562 = vunpack.c.l.s4 1966171168
    %v563 = vunpack.c.0.s8 %v562
    %v564 = vlaneseq
    %v565 = vshrl.u32 %v564, 7
    %v566 = vsub.s32 %v563, %v565
    %v567 = vrot.slane %v551, %v566
    %v569 = vunpack.c.l.s4 1966171168
    %v570 = vunpack.c.0.s8 %v569
    %v571 = vlaneseq
    %v572 = vshrl.u32 %v571, 7
    %v573 = vsub.s32 %v570, %v572
    %v574 = vrot.slane %v558, %v573
    %v576 = vunpack.c.l.s4 1966171168
    %v577 = vunpack.c.0.s8 %v576
    %v578 = vlaneseq
    %v579 = vshrl.u32 %v578, 7
    %v580 = vsub.s32 %v577, %v579
    %v581 = vrot.slane %v559, %v580
    %v583 = vunpack.c.l.s4 1966171168
    %v584 = vunpack.c.0.s8 %v583
    %v585 = vlaneseq
    %v586 = vshrl.u32 %v585, 7
    %v587 = vsub.s32 %v584, %v586
    %v588 = vrot.slane %v560, %v587
    %v589 = vcombine.high %v567, %v567
    %v590 = vcombine.high %v574, %v574
    %v591 = vcombine.high %v581, %v581
    %v592 = vcombine.high %v588, %v588
    %v593 = vcombine.high %v193, %v193
    %v595 = vunpack.c.l.s4 1966171168
    %v596 = vunpack.c.0.s8 %v595
    %v597 = vlaneseq
    %v598 = vshrl.u32 %v597, 7
    %v599 = vsub.s32 %v596, %v598
    %v600 = vrot.slane %v193, %v599
    %v602 = vunpack.c.l.s4 1966171168
    %v603 = vunpack.c.0.s8 %v602
    %v604 = vlaneseq
    %v605 = vshrl.u32 %v604, 7
    %v606 = vsub.s32 %v603, %v605
    %v607 = vrot.slane %v593, %v606
    %v608 = vcombine.high %v600, %v600
    %v609 = vcombine.high %v607, %v607
    %v611 = vunpack.c.l.s4 1966171168
    %v612 = vunpack.c.0.s8 %v611
    %v613 = vlaneseq
    %v614 = vshrl.u32 %v613, 7
    %v615 = vsub.s32 %v612, %v614
    %v616 = vrot.slane %v600, %v615
    %v618 = vunpack.c.l.s4 1966171168
    %v619 = vunpack.c.0.s8 %v618
    %v620 = vlaneseq
    %v621 = vshrl.u32 %v620, 7
    %v622 = vsub.s32 %v619, %v621
    %v623 = vrot.slane %v607, %v622
    %v625 = vunpack.c.l.s4 1966171168
    %v626 = vunpack.c.0.s8 %v625
    %v627 = vlaneseq
    %v628 = vshrl.u32 %v627, 7
    %v629 = vsub.s32 %v626, %v628
    %v630 = vrot.slane %v608, %v629
    %v632 = vunpack.c.l.s4 1966171168
    %v633 = vunpack.c.0.s8 %v632
    %v634 = vlaneseq
    %v635 = vshrl.u32 %v634, 7
    %v636 = vsub.s32 %v633, %v635
    %v637 = vrot.slane %v609, %v636
    %v638 = vcombine.high %v616, %v616
    %v639 = vcombine.high %v623, %v623
    %v640 = vcombine.high %v630, %v630
    %v641 = vcombine.high %v637, %v637
    %v642 = vcombine.high %v199, %v199
    %v644 = vunpack.c.l.s4 1966171168
    %v645 = vunpack.c.0.s8 %v644
    %v646 = vlaneseq
    %v647 = vshrl.u32 %v646, 7
    %v648 = vsub.s32 %v645, %v647
    %v649 = vrot.slane %v199, %v648
    %v651 = vunpack.c.l.s4 1966171168
    %v652 = vunpack.c.0.s8 %v651
    %v653 = vlaneseq
    %v654 = vshrl.u32 %v653, 7
    %v655 = vsub.s32 %v652, %v654
    %v656 = vrot.slane %v642, %v655
    %v657 = vcombine.high %v649, %v649
    %v658 = vcombine.high %v656, %v656
    %v660 = vunpack.c.l.s4 1966171168
    %v661 = vunpack.c.0.s8 %v660
    %v662 = vlaneseq
    %v663 = vshrl.u32 %v662, 7
    %v664 = vsub.s32 %v661, %v663
    %v665 = vrot.slane %v649, %v664
    %v667 = vunpack.c.l.s4 1966171168
    %v668 = vunpack.c.0.s8 %v667
    %v669 = vlaneseq
    %v670 = vshrl.u32 %v669, 7
    %v671 = vsub.s32 %v668, %v670
    %v672 = vrot.slane %v656, %v671
    %v674 = vunpack.c.l.s4 1966171168
    %v675 = vunpack.c.0.s8 %v674
    %v676 = vlaneseq
    %v677 = vshrl.u32 %v676, 7
    %v678 = vsub.s32 %v675, %v677
    %v679 = vrot.slane %v657, %v678
    %v681 = vunpack.c.l.s4 1966171168
    %v682 = vunpack.c.0.s8 %v681
    %v683 = vlaneseq
    %v684 = vshrl.u32 %v683, 7
    %v685 = vsub.s32 %v682, %v684
    %v686 = vrot.slane %v658, %v685
    %v687 = vcombine.high %v665, %v665
    %v688 = vcombine.high %v672, %v672
    %v689 = vcombine.high %v679, %v679
    %v690 = vcombine.high %v686, %v686
    %v691 = vcombine.high %v205, %v205
    %v693 = vunpack.c.l.s4 1966171168
    %v694 = vunpack.c.0.s8 %v693
    %v695 = vlaneseq
    %v696 = vshrl.u32 %v695, 7
    %v697 = vsub.s32 %v694, %v696
    %v698 = vrot.slane %v205, %v697
    %v700 = vunpack.c.l.s4 1966171168
    %v701 = vunpack.c.0.s8 %v700
    %v702 = vlaneseq
    %v703 = vshrl.u32 %v702, 7
    %v704 = vsub.s32 %v701, %v703
    %v705 = vrot.slane %v691, %v704
    %v706 = vcombine.high %v698, %v698
    %v707 = vcombine.high %v705, %v705
    %v709 = vunpack.c.l.s4 1966171168
    %v710 = vunpack.c.0.s8 %v709
    %v711 = vlaneseq
    %v712 = vshrl.u32 %v711, 7
    %v713 = vsub.s32 %v710, %v712
    %v714 = vrot.slane %v698, %v713
    %v716 = vunpack.c.l.s4 1966171168
    %v717 = vunpack.c.0.s8 %v716
    %v718 = vlaneseq
    %v719 = vshrl.u32 %v718, 7
    %v720 = vsub.s32 %v717, %v719
    %v721 = vrot.slane %v705, %v720
    %v723 = vunpack.c.l.s4 1966171168
    %v724 = vunpack.c.0.s8 %v723
    %v725 = vlaneseq
    %v726 = vshrl.u32 %v725, 7
    %v727 = vsub.s32 %v724, %v726
    %v728 = vrot.slane %v706, %v727
    %v730 = vunpack.c.l.s4 1966171168
    %v731 = vunpack.c.0.s8 %v730
    %v732 = vlaneseq
    %v733 = vshrl.u32 %v732, 7
    %v734 = vsub.s32 %v731, %v733
    %v735 = vrot.slane %v707, %v734
    %v736 = vcombine.high %v714, %v714
    %v737 = vcombine.high %v721, %v721
    %v738 = vcombine.high %v728, %v728
    %v739 = vcombine.high %v735, %v735
    %v740 = vlaneseq
    %v741 = vshrl.u32 %v740, 7
    %v742 = vsub.s32 0, %v741
    %v743 = vrot.slane %v567, %v742
    %v744 = vlaneseq
    %v745 = vshrl.u32 %v744, 7
    %v746 = vsub.s32 0, %v745
    %v747 = vrot.slane %v581, %v746
    %v748 = vlaneseq
    %v749 = vshrl.u32 %v748, 7
    %v750 = vsub.s32 0, %v749
    %v751 = vrot.slane %v589, %v750
    %v752 = vlaneseq
    %v753 = vshrl.u32 %v752, 7
    %v754 = vsub.s32 0, %v753
    %v755 = vrot.slane %v591, %v754
    %v756 = vlaneseq
    %v757 = vshrl.u32 %v756, 7
    %v758 = vsub.s32 0, %v757
    %v759 = vrot.slane %v574, %v758
    %v760 = vlaneseq
    %v761 = vshrl.u32 %v760, 7
    %v762 = vsub.s32 0, %v761
    %v763 = vrot.slane %v588, %v762
    %v764 = vlaneseq
    %v765 = vshrl.u32 %v764, 7
    %v766 = vsub.s32 0, %v765
    %v767 = vrot.slane %v590, %v766
    %v768 = vlaneseq
    %v769 = vshrl.u32 %v768, 7
    %v770 = vsub.s32 0, %v769
    %v771 = vrot.slane %v592, %v770
    %v772 = vlaneseq
    %v773 = vshrl.u32 %v772, 7
    %v774 = vsub.s32 0, %v773
    %v775 = vrot.slane %v616, %v774
    %v776 = vlaneseq
    %v777 = vshrl.u32 %v776, 7
    %v778 = vsub.s32 0, %v777
    %v779 = vrot.slane %v630, %v778
    %v780 = vlaneseq
    %v781 = vshrl.u32 %v780, 7
    %v782 = vsub.s32 0, %v781
    %v783 = vrot.slane %v638, %v782
    %v784 = vlaneseq
    %v785 = vshrl.u32 %v784, 7
    %v786 = vsub.s32 0, %v785
    %v787 = vrot.slane %v640, %v786
    %v788 = vlaneseq
    %v789 = vshrl.u32 %v788, 7
    %v790 = vsub.s32 0, %v789
    %v791 = vrot.slane %v623, %v790
    %v792 = vlaneseq
    %v793 = vshrl.u32 %v792, 7
    %v794 = vsub.s32 0, %v793
    %v795 = vrot.slane %v637, %v794
    %v796 = vlaneseq
    %v797 = vshrl.u32 %v796, 7
    %v798 = vsub.s32 0, %v797
    %v799 = vrot.slane %v639, %v798
    %v800 = vlaneseq
    %v801 = vshrl.u32 %v800, 7
    %v802 = vsub.s32 0, %v801
    %v803 = vrot.slane %v641, %v802
    %v804 = vlaneseq
    %v805 = vshrl.u32 %v804, 7
    %v806 = vsub.s32 0, %v805
    %v807 = vrot.slane %v665, %v806
    %v808 = vlaneseq
    %v809 = vshrl.u32 %v808, 7
    %v810 = vsub.s32 0, %v809
    %v811 = vrot.slane %v679, %v810
    %v812 = vlaneseq
    %v813 = vshrl.u32 %v812, 7
    %v814 = vsub.s32 0, %v813
    %v815 = vrot.slane %v687, %v814
    %v816 = vlaneseq
    %v817 = vshrl.u32 %v816, 7
    %v818 = vsub.s32 0, %v817
    %v819 = vrot.slane %v689, %v818
    %v820 = vlaneseq
    %v821 = vshrl.u32 %v820, 7
    %v822 = vsub.s32 0, %v821
    %v823 = vrot.slane %v672, %v822
    %v824 = vlaneseq
    %v825 = vshrl.u32 %v824, 7
    %v826 = vsub.s32 0, %v825
    %v827 = vrot.slane %v686, %v826
    %v828 = vlaneseq
    %v829 = vshrl.u32 %v828, 7
    %v830 = vsub.s32 0, %v829
    %v831 = vrot.slane %v688, %v830
    %v832 = vlaneseq
    %v833 = vshrl.u32 %v832, 7
    %v834 = vsub.s32 0, %v833
    %v835 = vrot.slane %v690, %v834
    %v836 = vlaneseq
    %v837 = vshrl.u32 %v836, 7
    %v838 = vsub.s32 0, %v837
    %v839 = vrot.slane %v714, %v838
    %v840 = vlaneseq
    %v841 = vshrl.u32 %v840, 7
    %v842 = vsub.s32 0, %v841
    %v843 = vrot.slane %v728, %v842
    %v844 = vlaneseq
    %v845 = vshrl.u32 %v844, 7
    %v846 = vsub.s32 0, %v845
    %v847 = vrot.slane %v736, %v846
    %v848 = vlaneseq
    %v849 = vshrl.u32 %v848, 7
    %v850 = vsub.s32 0, %v849
    %v851 = vrot.slane %v738, %v850
    %v852 = vlaneseq
    %v853 = vshrl.u32 %v852, 7
    %v854 = vsub.s32 0, %v853
    %v855 = vrot.slane %v721, %v854
    %v856 = vlaneseq
    %v857 = vshrl.u32 %v856, 7
    %v858 = vsub.s32 0, %v857
    %v859 = vrot.slane %v735, %v858
    %v860 = vlaneseq
    %v861 = vshrl.u32 %v860, 7
    %v862 = vsub.s32 0, %v861
    %v863 = vrot.slane %v737, %v862
    %v864 = vlaneseq
    %v865 = vshrl.u32 %v864, 7
    %v866 = vsub.s32 0, %v865
    %v867 = vrot.slane %v739, %v866
    %v900 = vadd.f32 %v743, %v189
    %v901 = vadd.f32 %v747, %v189
    %v902 = vadd.f32 %v751, %v189
    %v903 = vadd.f32 %v755, %v189
    %v904 = vadd.f32 %v759, %v189
    %v905 = vadd.f32 %v763, %v189
    %v906 = vadd.f32 %v767, %v189
    %v907 = vadd.f32 %v771, %v189
    %v908 = vadd.f32 %v775, %v195
    %v909 = vadd.f32 %v779, %v195
    %v910 = vadd.f32 %v783, %v195
    %v911 = vadd.f32 %v787, %v195
    %v912 = vadd.f32 %v791, %v195
    %v913 = vadd.f32 %v795, %v195
    %v914 = vadd.f32 %v799, %v195
    %v915 = vadd.f32 %v803, %v195
    %v916 = vadd.f32 %v807, %v201
    %v917 = vadd.f32 %v811, %v201
    %v918 = vadd.f32 %v815, %v201
    %v919 = vadd.f32 %v819, %v201
    %v920 = vadd.f32 %v823, %v201
    %v921 = vadd.f32 %v827, %v201
    %v922 = vadd.f32 %v831, %v201
    %v923 = vadd.f32 %v835, %v201
    %v924 = vadd.f32 %v839, %v207
    %v925 = vadd.f32 %v843, %v207
    %v926 = vadd.f32 %v847, %v207
    %v927 = vadd.f32 %v851, %v207
    %v928 = vadd.f32 %v855, %v207
    %v929 = vadd.f32 %v859, %v207
    %v930 = vadd.f32 %v863, %v207
    %v931 = vadd.f32 %v867, %v207
    %v932 = vadd.f32 %v900, %v381
    %v933 = vadd.f32 %v901, %v386
    %v934 = vadd.f32 %v902, %v391
    %v935 = vadd.f32 %v903, %v396
    %v936 = vadd.f32 %v904, %v401
    %v937 = vadd.f32 %v905, %v406
    %v938 = vadd.f32 %v906, %v411
    %v939 = vadd.f32 %v907, %v416
    %v940 = vadd.f32 %v908, %v421
    %v941 = vadd.f32 %v909, %v426
    %v942 = vadd.f32 %v910, %v431
    %v943 = vadd.f32 %v911, %v436
    %v944 = vadd.f32 %v912, %v441
    %v945 = vadd.f32 %v913, %v446
    %v946 = vadd.f32 %v914, %v451
    %v947 = vadd.f32 %v915, %v456
    %v948 = vadd.f32 %v916, %v461
    %v949 = vadd.f32 %v917, %v466
    %v950 = vadd.f32 %v918, %v471
    %v951 = vadd.f32 %v919, %v476
    %v952 = vadd.f32 %v920, %v481
    %v953 = vadd.f32 %v921, %v486
    %v954 = vadd.f32 %v922, %v491
    %v955 = vadd.f32 %v923, %v496
    %v956 = vadd.f32 %v924, %v501
    %v957 = vadd.f32 %v925, %v506
    %v958 = vadd.f32 %v926, %v511
    %v959 = vadd.f32 %v927, %v516
    %v960 = vadd.f32 %v928, %v521
    %v961 = vadd.f32 %v929, %v526
    %v962 = vadd.f32 %v930, %v531
    %v963 = vadd.f32 %v931, %v536
    %964 = vadd.xlane.f32.xlu0 %v932
    %v965 = vpop.xlane.xlu0 %964
    %966 = vadd.xlane.f32.xlu0 %v933
    %v967 = vpop.xlane.xlu0 %966
    %968 = vadd.xlane.f32.xlu0 %v934
    %v969 = vpop.xlane.xlu0 %968
    %970 = vadd.xlane.f32.xlu0 %v935
    %v971 = vpop.xlane.xlu0 %970
    %972 = vadd.xlane.f32.xlu0 %v936
    %v973 = vpop.xlane.xlu0 %972
    %974 = vadd.xlane.f32.xlu0 %v937
    %v975 = vpop.xlane.xlu0 %974
    %976 = vadd.xlane.f32.xlu0 %v938
    %v977 = vpop.xlane.xlu0 %976
    %978 = vadd.xlane.f32.xlu0 %v939
    %v979 = vpop.xlane.xlu0 %978
    %980 = vadd.xlane.f32.xlu0 %v940
    %v981 = vpop.xlane.xlu0 %980
    %982 = vadd.xlane.f32.xlu0 %v941
    %v983 = vpop.xlane.xlu0 %982
    %984 = vadd.xlane.f32.xlu0 %v942
    %v985 = vpop.xlane.xlu0 %984
    %986 = vadd.xlane.f32.xlu0 %v943
    %v987 = vpop.xlane.xlu0 %986
    %988 = vadd.xlane.f32.xlu0 %v944
    %v989 = vpop.xlane.xlu0 %988
    %990 = vadd.xlane.f32.xlu0 %v945
    %v991 = vpop.xlane.xlu0 %990
    %992 = vadd.xlane.f32.xlu0 %v946
    %v993 = vpop.xlane.xlu0 %992
    %994 = vadd.xlane.f32.xlu0 %v947
    %v995 = vpop.xlane.xlu0 %994
    %996 = vadd.xlane.f32.xlu0 %v948
    %v997 = vpop.xlane.xlu0 %996
    %998 = vadd.xlane.f32.xlu0 %v949
    %v999 = vpop.xlane.xlu0 %998
    %1000 = vadd.xlane.f32.xlu0 %v950
    %v1001 = vpop.xlane.xlu0 %1000
    %1002 = vadd.xlane.f32.xlu0 %v951
    %v1003 = vpop.xlane.xlu0 %1002
    %1004 = vadd.xlane.f32.xlu0 %v952
    %v1005 = vpop.xlane.xlu0 %1004
    %1006 = vadd.xlane.f32.xlu0 %v953
    %v1007 = vpop.xlane.xlu0 %1006
    %1008 = vadd.xlane.f32.xlu0 %v954
    %v1009 = vpop.xlane.xlu0 %1008
    %1010 = vadd.xlane.f32.xlu0 %v955
    %v1011 = vpop.xlane.xlu0 %1010
    %1012 = vadd.xlane.f32.xlu0 %v956
    %v1013 = vpop.xlane.xlu0 %1012
    %1014 = vadd.xlane.f32.xlu0 %v957
    %v1015 = vpop.xlane.xlu0 %1014
    %1016 = vadd.xlane.f32.xlu0 %v958
    %v1017 = vpop.xlane.xlu0 %1016
    %1018 = vadd.xlane.f32.xlu0 %v959
    %v1019 = vpop.xlane.xlu0 %1018
    %1020 = vadd.xlane.f32.xlu0 %v960
    %v1021 = vpop.xlane.xlu0 %1020
    %1022 = vadd.xlane.f32.xlu0 %v961
    %v1023 = vpop.xlane.xlu0 %1022
    %1024 = vadd.xlane.f32.xlu0 %v962
    %v1025 = vpop.xlane.xlu0 %1024
    %1026 = vadd.xlane.f32.xlu0 %v963
    %v1027 = vpop.xlane.xlu0 %1026
    %v1028 = vmul.f32 %v965, 0.03125
    %v1029 = vmul.f32 %v967, 0.03125
    %v1030 = vmul.f32 %v969, 0.03125
    %v1031 = vmul.f32 %v971, 0.03125
    %v1032 = vmul.f32 %v973, 0.03125
    %v1033 = vmul.f32 %v975, 0.03125
    %v1034 = vmul.f32 %v977, 0.03125
    %v1035 = vmul.f32 %v979, 0.03125
    %v1036 = vmul.f32 %v981, 0.03125
    %v1037 = vmul.f32 %v983, 0.03125
    %v1038 = vmul.f32 %v985, 0.03125
    %v1039 = vmul.f32 %v987, 0.03125
    %v1040 = vmul.f32 %v989, 0.03125
    %v1041 = vmul.f32 %v991, 0.03125
    %v1042 = vmul.f32 %v993, 0.03125
    %v1043 = vmul.f32 %v995, 0.03125
    %v1044 = vmul.f32 %v997, 0.03125
    %v1045 = vmul.f32 %v999, 0.03125
    %v1046 = vmul.f32 %v1001, 0.03125
    %v1047 = vmul.f32 %v1003, 0.03125
    %v1048 = vmul.f32 %v1005, 0.03125
    %v1049 = vmul.f32 %v1007, 0.03125
    %v1050 = vmul.f32 %v1009, 0.03125
    %v1051 = vmul.f32 %v1011, 0.03125
    %v1052 = vmul.f32 %v1013, 0.03125
    %v1053 = vmul.f32 %v1015, 0.03125
    %v1054 = vmul.f32 %v1017, 0.03125
    %v1055 = vmul.f32 %v1019, 0.03125
    %v1056 = vmul.f32 %v1021, 0.03125
    %v1057 = vmul.f32 %v1023, 0.03125
    %v1058 = vmul.f32 %v1025, 0.03125
    %v1059 = vmul.f32 %v1027, 0.03125
    %v1060 = vmul.f32 %v932, %v932
    %v1061 = vmul.f32 %v933, %v933
    %v1062 = vmul.f32 %v934, %v934
    %v1063 = vmul.f32 %v935, %v935
    %v1064 = vmul.f32 %v936, %v936
    %v1065 = vmul.f32 %v937, %v937
    %v1066 = vmul.f32 %v938, %v938
    %v1067 = vmul.f32 %v939, %v939
    %v1068 = vmul.f32 %v940, %v940
    %v1069 = vmul.f32 %v941, %v941
    %v1070 = vmul.f32 %v942, %v942
    %v1071 = vmul.f32 %v943, %v943
    %v1072 = vmul.f32 %v944, %v944
    %v1073 = vmul.f32 %v945, %v945
    %v1074 = vmul.f32 %v946, %v946
    %v1075 = vmul.f32 %v947, %v947
    %v1076 = vmul.f32 %v948, %v948
    %v1077 = vmul.f32 %v949, %v949
    %v1078 = vmul.f32 %v950, %v950
    %v1079 = vmul.f32 %v951, %v951
    %v1080 = vmul.f32 %v952, %v952
    %v1081 = vmul.f32 %v953, %v953
    %v1082 = vmul.f32 %v954, %v954
    %v1083 = vmul.f32 %v955, %v955
    %v1084 = vmul.f32 %v956, %v956
    %v1085 = vmul.f32 %v957, %v957
    %v1086 = vmul.f32 %v958, %v958
    %v1087 = vmul.f32 %v959, %v959
    %v1088 = vmul.f32 %v960, %v960
    %v1089 = vmul.f32 %v961, %v961
    %v1090 = vmul.f32 %v962, %v962
    %v1091 = vmul.f32 %v963, %v963
    %1092 = vadd.xlane.f32.xlu0 %v1060
    %v1093 = vpop.xlane.xlu0 %1092
    %1094 = vadd.xlane.f32.xlu0 %v1061
    %v1095 = vpop.xlane.xlu0 %1094
    %1096 = vadd.xlane.f32.xlu0 %v1062
    %v1097 = vpop.xlane.xlu0 %1096
    %1098 = vadd.xlane.f32.xlu0 %v1063
    %v1099 = vpop.xlane.xlu0 %1098
    %1100 = vadd.xlane.f32.xlu0 %v1064
    %v1101 = vpop.xlane.xlu0 %1100
    %1102 = vadd.xlane.f32.xlu0 %v1065
    %v1103 = vpop.xlane.xlu0 %1102
    %1104 = vadd.xlane.f32.xlu0 %v1066
    %v1105 = vpop.xlane.xlu0 %1104
    %1106 = vadd.xlane.f32.xlu0 %v1067
    %v1107 = vpop.xlane.xlu0 %1106
    %1108 = vadd.xlane.f32.xlu0 %v1068
    %v1109 = vpop.xlane.xlu0 %1108
    %1110 = vadd.xlane.f32.xlu0 %v1069
    %v1111 = vpop.xlane.xlu0 %1110
    %1112 = vadd.xlane.f32.xlu0 %v1070
    %v1113 = vpop.xlane.xlu0 %1112
    %1114 = vadd.xlane.f32.xlu0 %v1071
    %v1115 = vpop.xlane.xlu0 %1114
    %1116 = vadd.xlane.f32.xlu0 %v1072
    %v1117 = vpop.xlane.xlu0 %1116
    %1118 = vadd.xlane.f32.xlu0 %v1073
    %v1119 = vpop.xlane.xlu0 %1118
    %1120 = vadd.xlane.f32.xlu0 %v1074
    %v1121 = vpop.xlane.xlu0 %1120
    %1122 = vadd.xlane.f32.xlu0 %v1075
    %v1123 = vpop.xlane.xlu0 %1122
    %1124 = vadd.xlane.f32.xlu0 %v1076
    %v1125 = vpop.xlane.xlu0 %1124
    %1126 = vadd.xlane.f32.xlu0 %v1077
    %v1127 = vpop.xlane.xlu0 %1126
    %1128 = vadd.xlane.f32.xlu0 %v1078
    %v1129 = vpop.xlane.xlu0 %1128
    %1130 = vadd.xlane.f32.xlu0 %v1079
    %v1131 = vpop.xlane.xlu0 %1130
    %1132 = vadd.xlane.f32.xlu0 %v1080
    %v1133 = vpop.xlane.xlu0 %1132
    %1134 = vadd.xlane.f32.xlu0 %v1081
    %v1135 = vpop.xlane.xlu0 %1134
    %1136 = vadd.xlane.f32.xlu0 %v1082
    %v1137 = vpop.xlane.xlu0 %1136
    %1138 = vadd.xlane.f32.xlu0 %v1083
    %v1139 = vpop.xlane.xlu0 %1138
    %1140 = vadd.xlane.f32.xlu0 %v1084
    %v1141 = vpop.xlane.xlu0 %1140
    %1142 = vadd.xlane.f32.xlu0 %v1085
    %v1143 = vpop.xlane.xlu0 %1142
    %1144 = vadd.xlane.f32.xlu0 %v1086
    %v1145 = vpop.xlane.xlu0 %1144
    %1146 = vadd.xlane.f32.xlu0 %v1087
    %v1147 = vpop.xlane.xlu0 %1146
    %1148 = vadd.xlane.f32.xlu0 %v1088
    %v1149 = vpop.xlane.xlu0 %1148
    %1150 = vadd.xlane.f32.xlu0 %v1089
    %v1151 = vpop.xlane.xlu0 %1150
    %1152 = vadd.xlane.f32.xlu0 %v1090
    %v1153 = vpop.xlane.xlu0 %1152
    %1154 = vadd.xlane.f32.xlu0 %v1091
    %v1155 = vpop.xlane.xlu0 %1154
    %v1156 = vmul.f32 %v1093, 0.03125
    %v1157 = vmul.f32 %v1095, 0.03125
    %v1158 = vmul.f32 %v1097, 0.03125
    %v1159 = vmul.f32 %v1099, 0.03125
    %v1160 = vmul.f32 %v1101, 0.03125
    %v1161 = vmul.f32 %v1103, 0.03125
    %v1162 = vmul.f32 %v1105, 0.03125
    %v1163 = vmul.f32 %v1107, 0.03125
    %v1164 = vmul.f32 %v1109, 0.03125
    %v1165 = vmul.f32 %v1111, 0.03125
    %v1166 = vmul.f32 %v1113, 0.03125
    %v1167 = vmul.f32 %v1115, 0.03125
    %v1168 = vmul.f32 %v1117, 0.03125
    %v1169 = vmul.f32 %v1119, 0.03125
    %v1170 = vmul.f32 %v1121, 0.03125
    %v1171 = vmul.f32 %v1123, 0.03125
    %v1172 = vmul.f32 %v1125, 0.03125
    %v1173 = vmul.f32 %v1127, 0.03125
    %v1174 = vmul.f32 %v1129, 0.03125
    %v1175 = vmul.f32 %v1131, 0.03125
    %v1176 = vmul.f32 %v1133, 0.03125
    %v1177 = vmul.f32 %v1135, 0.03125
    %v1178 = vmul.f32 %v1137, 0.03125
    %v1179 = vmul.f32 %v1139, 0.03125
    %v1180 = vmul.f32 %v1141, 0.03125
    %v1181 = vmul.f32 %v1143, 0.03125
    %v1182 = vmul.f32 %v1145, 0.03125
    %v1183 = vmul.f32 %v1147, 0.03125
    %v1184 = vmul.f32 %v1149, 0.03125
    %v1185 = vmul.f32 %v1151, 0.03125
    %v1186 = vmul.f32 %v1153, 0.03125
    %v1187 = vmul.f32 %v1155, 0.03125
    %v1188 = vmul.f32 %v1028, %v1028
    %v1189 = vmul.f32 %v1029, %v1029
    %v1190 = vmul.f32 %v1030, %v1030
    %v1191 = vmul.f32 %v1031, %v1031
    %v1192 = vmul.f32 %v1032, %v1032
    %v1193 = vmul.f32 %v1033, %v1033
    %v1194 = vmul.f32 %v1034, %v1034
    %v1195 = vmul.f32 %v1035, %v1035
    %v1196 = vmul.f32 %v1036, %v1036
    %v1197 = vmul.f32 %v1037, %v1037
    %v1198 = vmul.f32 %v1038, %v1038
    %v1199 = vmul.f32 %v1039, %v1039
    %v1200 = vmul.f32 %v1040, %v1040
    %v1201 = vmul.f32 %v1041, %v1041
    %v1202 = vmul.f32 %v1042, %v1042
    %v1203 = vmul.f32 %v1043, %v1043
    %v1204 = vmul.f32 %v1044, %v1044
    %v1205 = vmul.f32 %v1045, %v1045
    %v1206 = vmul.f32 %v1046, %v1046
    %v1207 = vmul.f32 %v1047, %v1047
    %v1208 = vmul.f32 %v1048, %v1048
    %v1209 = vmul.f32 %v1049, %v1049
    %v1210 = vmul.f32 %v1050, %v1050
    %v1211 = vmul.f32 %v1051, %v1051
    %v1212 = vmul.f32 %v1052, %v1052
    %v1213 = vmul.f32 %v1053, %v1053
    %v1214 = vmul.f32 %v1054, %v1054
    %v1215 = vmul.f32 %v1055, %v1055
    %v1216 = vmul.f32 %v1056, %v1056
    %v1217 = vmul.f32 %v1057, %v1057
    %v1218 = vmul.f32 %v1058, %v1058
    %v1219 = vmul.f32 %v1059, %v1059
    %v1220 = vsub.f32 %v1156, %v1188
    %v1221 = vsub.f32 %v1157, %v1189
    %v1222 = vsub.f32 %v1158, %v1190
    %v1223 = vsub.f32 %v1159, %v1191
    %v1224 = vsub.f32 %v1160, %v1192
    %v1225 = vsub.f32 %v1161, %v1193
    %v1226 = vsub.f32 %v1162, %v1194
    %v1227 = vsub.f32 %v1163, %v1195
    %v1228 = vsub.f32 %v1164, %v1196
    %v1229 = vsub.f32 %v1165, %v1197
    %v1230 = vsub.f32 %v1166, %v1198
    %v1231 = vsub.f32 %v1167, %v1199
    %v1232 = vsub.f32 %v1168, %v1200
    %v1233 = vsub.f32 %v1169, %v1201
    %v1234 = vsub.f32 %v1170, %v1202
    %v1235 = vsub.f32 %v1171, %v1203
    %v1236 = vsub.f32 %v1172, %v1204
    %v1237 = vsub.f32 %v1173, %v1205
    %v1238 = vsub.f32 %v1174, %v1206
    %v1239 = vsub.f32 %v1175, %v1207
    %v1240 = vsub.f32 %v1176, %v1208
    %v1241 = vsub.f32 %v1177, %v1209
    %v1242 = vsub.f32 %v1178, %v1210
    %v1243 = vsub.f32 %v1179, %v1211
    %v1244 = vsub.f32 %v1180, %v1212
    %v1245 = vsub.f32 %v1181, %v1213
    %v1246 = vsub.f32 %v1182, %v1214
    %v1247 = vsub.f32 %v1183, %v1215
    %v1248 = vsub.f32 %v1184, %v1216
    %v1249 = vsub.f32 %v1185, %v1217
    %v1250 = vsub.f32 %v1186, %v1218
    %v1251 = vsub.f32 %v1187, %v1219
    %v1252 = vmax.f32 %v1220, 0.0
    %v1253 = vmax.f32 %v1221, 0.0
    %v1254 = vmax.f32 %v1222, 0.0
    %v1255 = vmax.f32 %v1223, 0.0
    %v1256 = vmax.f32 %v1224, 0.0
    %v1257 = vmax.f32 %v1225, 0.0
    %v1258 = vmax.f32 %v1226, 0.0
    %v1259 = vmax.f32 %v1227, 0.0
    %v1260 = vmax.f32 %v1228, 0.0
    %v1261 = vmax.f32 %v1229, 0.0
    %v1262 = vmax.f32 %v1230, 0.0
    %v1263 = vmax.f32 %v1231, 0.0
    %v1264 = vmax.f32 %v1232, 0.0
    %v1265 = vmax.f32 %v1233, 0.0
    %v1266 = vmax.f32 %v1234, 0.0
    %v1267 = vmax.f32 %v1235, 0.0
    %v1268 = vmax.f32 %v1236, 0.0
    %v1269 = vmax.f32 %v1237, 0.0
    %v1270 = vmax.f32 %v1238, 0.0
    %v1271 = vmax.f32 %v1239, 0.0
    %v1272 = vmax.f32 %v1240, 0.0
    %v1273 = vmax.f32 %v1241, 0.0
    %v1274 = vmax.f32 %v1242, 0.0
    %v1275 = vmax.f32 %v1243, 0.0
    %v1276 = vmax.f32 %v1244, 0.0
    %v1277 = vmax.f32 %v1245, 0.0
    %v1278 = vmax.f32 %v1246, 0.0
    %v1279 = vmax.f32 %v1247, 0.0
    %v1280 = vmax.f32 %v1248, 0.0
    %v1281 = vmax.f32 %v1249, 0.0
    %v1282 = vmax.f32 %v1250, 0.0
    %v1283 = vmax.f32 %v1251, 0.0
    %v1284 = vsub.f32 %v932, %v1028
    %v1285 = vsub.f32 %v933, %v1029
    %v1286 = vsub.f32 %v934, %v1030
    %v1287 = vsub.f32 %v935, %v1031
    %v1288 = vsub.f32 %v936, %v1032
    %v1289 = vsub.f32 %v937, %v1033
    %v1290 = vsub.f32 %v938, %v1034
    %v1291 = vsub.f32 %v939, %v1035
    %v1292 = vsub.f32 %v940, %v1036
    %v1293 = vsub.f32 %v941, %v1037
    %v1294 = vsub.f32 %v942, %v1038
    %v1295 = vsub.f32 %v943, %v1039
    %v1296 = vsub.f32 %v944, %v1040
    %v1297 = vsub.f32 %v945, %v1041
    %v1298 = vsub.f32 %v946, %v1042
    %v1299 = vsub.f32 %v947, %v1043
    %v1300 = vsub.f32 %v948, %v1044
    %v1301 = vsub.f32 %v949, %v1045
    %v1302 = vsub.f32 %v950, %v1046
    %v1303 = vsub.f32 %v951, %v1047
    %v1304 = vsub.f32 %v952, %v1048
    %v1305 = vsub.f32 %v953, %v1049
    %v1306 = vsub.f32 %v954, %v1050
    %v1307 = vsub.f32 %v955, %v1051
    %v1308 = vsub.f32 %v956, %v1052
    %v1309 = vsub.f32 %v957, %v1053
    %v1310 = vsub.f32 %v958, %v1054
    %v1311 = vsub.f32 %v959, %v1055
    %v1312 = vsub.f32 %v960, %v1056
    %v1313 = vsub.f32 %v961, %v1057
    %v1314 = vsub.f32 %v962, %v1058
    %v1315 = vsub.f32 %v963, %v1059
    %v1316 = vadd.f32 %v1252, 1e-05
    %v1317 = vadd.f32 %v1253, 1e-05
    %v1318 = vadd.f32 %v1254, 1e-05
    %v1319 = vadd.f32 %v1255, 1e-05
    %v1320 = vadd.f32 %v1256, 1e-05
    %v1321 = vadd.f32 %v1257, 1e-05
    %v1322 = vadd.f32 %v1258, 1e-05
    %v1323 = vadd.f32 %v1259, 1e-05
    %v1324 = vadd.f32 %v1260, 1e-05
    %v1325 = vadd.f32 %v1261, 1e-05
    %v1326 = vadd.f32 %v1262, 1e-05
    %v1327 = vadd.f32 %v1263, 1e-05
    %v1328 = vadd.f32 %v1264, 1e-05
    %v1329 = vadd.f32 %v1265, 1e-05
    %v1330 = vadd.f32 %v1266, 1e-05
    %v1331 = vadd.f32 %v1267, 1e-05
    %v1332 = vadd.f32 %v1268, 1e-05
    %v1333 = vadd.f32 %v1269, 1e-05
    %v1334 = vadd.f32 %v1270, 1e-05
    %v1335 = vadd.f32 %v1271, 1e-05
    %v1336 = vadd.f32 %v1272, 1e-05
    %v1337 = vadd.f32 %v1273, 1e-05
    %v1338 = vadd.f32 %v1274, 1e-05
    %v1339 = vadd.f32 %v1275, 1e-05
    %v1340 = vadd.f32 %v1276, 1e-05
    %v1341 = vadd.f32 %v1277, 1e-05
    %v1342 = vadd.f32 %v1278, 1e-05
    %v1343 = vadd.f32 %v1279, 1e-05
    %v1344 = vadd.f32 %v1280, 1e-05
    %v1345 = vadd.f32 %v1281, 1e-05
    %v1346 = vadd.f32 %v1282, 1e-05
    %v1347 = vadd.f32 %v1283, 1e-05
    %v1348 = vrsqrt.pop %v1316
    %v1349 = vrsqrt.pop %v1317
    %v1350 = vrsqrt.pop %v1318
    %v1351 = vrsqrt.pop %v1319
    %v1352 = vrsqrt.pop %v1320
    %v1353 = vrsqrt.pop %v1321
    %v1354 = vrsqrt.pop %v1322
    %v1355 = vrsqrt.pop %v1323
    %v1356 = vrsqrt.pop %v1324
    %v1357 = vrsqrt.pop %v1325
    %v1358 = vrsqrt.pop %v1326
    %v1359 = vrsqrt.pop %v1327
    %v1360 = vrsqrt.pop %v1328
    %v1361 = vrsqrt.pop %v1329
    %v1362 = vrsqrt.pop %v1330
    %v1363 = vrsqrt.pop %v1331
    %v1364 = vrsqrt.pop %v1332
    %v1365 = vrsqrt.pop %v1333
    %v1366 = vrsqrt.pop %v1334
    %v1367 = vrsqrt.pop %v1335
    %v1368 = vrsqrt.pop %v1336
    %v1369 = vrsqrt.pop %v1337
    %v1370 = vrsqrt.pop %v1338
    %v1371 = vrsqrt.pop %v1339
    %v1372 = vrsqrt.pop %v1340
    %v1373 = vrsqrt.pop %v1341
    %v1374 = vrsqrt.pop %v1342
    %v1375 = vrsqrt.pop %v1343
    %v1376 = vrsqrt.pop %v1344
    %v1377 = vrsqrt.pop %v1345
    %v1378 = vrsqrt.pop %v1346
    %v1379 = vrsqrt.pop %v1347
    %v1380 = vmul.f32 %v1284, %v1348
    %v1381 = vmul.f32 %v1285, %v1349
    %v1382 = vmul.f32 %v1286, %v1350
    %v1383 = vmul.f32 %v1287, %v1351
    %v1384 = vmul.f32 %v1288, %v1352
    %v1385 = vmul.f32 %v1289, %v1353
    %v1386 = vmul.f32 %v1290, %v1354
    %v1387 = vmul.f32 %v1291, %v1355
    %v1388 = vmul.f32 %v1292, %v1356
    %v1389 = vmul.f32 %v1293, %v1357
    %v1390 = vmul.f32 %v1294, %v1358
    %v1391 = vmul.f32 %v1295, %v1359
    %v1392 = vmul.f32 %v1296, %v1360
    %v1393 = vmul.f32 %v1297, %v1361
    %v1394 = vmul.f32 %v1298, %v1362
    %v1395 = vmul.f32 %v1299, %v1363
    %v1396 = vmul.f32 %v1300, %v1364
    %v1397 = vmul.f32 %v1301, %v1365
    %v1398 = vmul.f32 %v1302, %v1366
    %v1399 = vmul.f32 %v1303, %v1367
    %v1400 = vmul.f32 %v1304, %v1368
    %v1401 = vmul.f32 %v1305, %v1369
    %v1402 = vmul.f32 %v1306, %v1370
    %v1403 = vmul.f32 %v1307, %v1371
    %v1404 = vmul.f32 %v1308, %v1372
    %v1405 = vmul.f32 %v1309, %v1373
    %v1406 = vmul.f32 %v1310, %v1374
    %v1407 = vmul.f32 %v1311, %v1375
    %v1408 = vmul.f32 %v1312, %v1376
    %v1409 = vmul.f32 %v1313, %v1377
    %v1410 = vmul.f32 %v1314, %v1378
    %v1411 = vmul.f32 %v1315, %v1379
    %v1412 = vlaneseq
    %v1413 = vshrl.u32 %v1412, 7
    %v1414 = vsub.s32 0, %v1413
    %v1415 = vrot.slane %v539, %v1414
    %v1416 = vmul.f32 %v1380, %v1415
    %v1417 = vmul.f32 %v1381, %v1415
    %v1418 = vmul.f32 %v1382, %v1415
    %v1419 = vmul.f32 %v1383, %v1415
    %v1420 = vmul.f32 %v1384, %v1415
    %v1421 = vmul.f32 %v1385, %v1415
    %v1422 = vmul.f32 %v1386, %v1415
    %v1423 = vmul.f32 %v1387, %v1415
    %v1424 = vmul.f32 %v1388, %v1415
    %v1425 = vmul.f32 %v1389, %v1415
    %v1426 = vmul.f32 %v1390, %v1415
    %v1427 = vmul.f32 %v1391, %v1415
    %v1428 = vmul.f32 %v1392, %v1415
    %v1429 = vmul.f32 %v1393, %v1415
    %v1430 = vmul.f32 %v1394, %v1415
    %v1431 = vmul.f32 %v1395, %v1415
    %v1432 = vmul.f32 %v1396, %v1415
    %v1433 = vmul.f32 %v1397, %v1415
    %v1434 = vmul.f32 %v1398, %v1415
    %v1435 = vmul.f32 %v1399, %v1415
    %v1436 = vmul.f32 %v1400, %v1415
    %v1437 = vmul.f32 %v1401, %v1415
    %v1438 = vmul.f32 %v1402, %v1415
    %v1439 = vmul.f32 %v1403, %v1415
    %v1440 = vmul.f32 %v1404, %v1415
    %v1441 = vmul.f32 %v1405, %v1415
    %v1442 = vmul.f32 %v1406, %v1415
    %v1443 = vmul.f32 %v1407, %v1415
    %v1444 = vmul.f32 %v1408, %v1415
    %v1445 = vmul.f32 %v1409, %v1415
    %v1446 = vmul.f32 %v1410, %v1415
    %v1447 = vmul.f32 %v1411, %v1415
    %v1448 = vlaneseq
    %v1449 = vshrl.u32 %v1448, 7
    %v1450 = vsub.s32 1, %v1449
    %v1451 = vrot.slane %v539, %v1450
    %v1452 = vadd.f32 %v1416, %v1451
    %v1453 = vadd.f32 %v1417, %v1451
    %v1454 = vadd.f32 %v1418, %v1451
    %v1455 = vadd.f32 %v1419, %v1451
    %v1456 = vadd.f32 %v1420, %v1451
    %v1457 = vadd.f32 %v1421, %v1451
    %v1458 = vadd.f32 %v1422, %v1451
    %v1459 = vadd.f32 %v1423, %v1451
    %v1460 = vadd.f32 %v1424, %v1451
    %v1461 = vadd.f32 %v1425, %v1451
    %v1462 = vadd.f32 %v1426, %v1451
    %v1463 = vadd.f32 %v1427, %v1451
    %v1464 = vadd.f32 %v1428, %v1451
    %v1465 = vadd.f32 %v1429, %v1451
    %v1466 = vadd.f32 %v1430, %v1451
    %v1467 = vadd.f32 %v1431, %v1451
    %v1468 = vadd.f32 %v1432, %v1451
    %v1469 = vadd.f32 %v1433, %v1451
    %v1470 = vadd.f32 %v1434, %v1451
    %v1471 = vadd.f32 %v1435, %v1451
    %v1472 = vadd.f32 %v1436, %v1451
    %v1473 = vadd.f32 %v1437, %v1451
    %v1474 = vadd.f32 %v1438, %v1451
    %v1475 = vadd.f32 %v1439, %v1451
    %v1476 = vadd.f32 %v1440, %v1451
    %v1477 = vadd.f32 %v1441, %v1451
    %v1478 = vadd.f32 %v1442, %v1451
    %v1479 = vadd.f32 %v1443, %v1451
    %v1480 = vadd.f32 %v1444, %v1451
    %v1481 = vadd.f32 %v1445, %v1451
    %v1482 = vadd.f32 %v1446, %v1451
    %v1483 = vadd.f32 %v1447, %v1451
    %v1484 = vmax.f32 %v1452, 0.0
    %v1485 = vmax.f32 %v1453, 0.0
    %v1486 = vmax.f32 %v1454, 0.0
    %v1487 = vmax.f32 %v1455, 0.0
    %v1488 = vmax.f32 %v1456, 0.0
    %v1489 = vmax.f32 %v1457, 0.0
    %v1490 = vmax.f32 %v1458, 0.0
    %v1491 = vmax.f32 %v1459, 0.0
    %v1492 = vmax.f32 %v1460, 0.0
    %v1493 = vmax.f32 %v1461, 0.0
    %v1494 = vmax.f32 %v1462, 0.0
    %v1495 = vmax.f32 %v1463, 0.0
    %v1496 = vmax.f32 %v1464, 0.0
    %v1497 = vmax.f32 %v1465, 0.0
    %v1498 = vmax.f32 %v1466, 0.0
    %v1499 = vmax.f32 %v1467, 0.0
    %v1500 = vmax.f32 %v1468, 0.0
    %v1501 = vmax.f32 %v1469, 0.0
    %v1502 = vmax.f32 %v1470, 0.0
    %v1503 = vmax.f32 %v1471, 0.0
    %v1504 = vmax.f32 %v1472, 0.0
    %v1505 = vmax.f32 %v1473, 0.0
    %v1506 = vmax.f32 %v1474, 0.0
    %v1507 = vmax.f32 %v1475, 0.0
    %v1508 = vmax.f32 %v1476, 0.0
    %v1509 = vmax.f32 %v1477, 0.0
    %v1510 = vmax.f32 %v1478, 0.0
    %v1511 = vmax.f32 %v1479, 0.0
    %v1512 = vmax.f32 %v1480, 0.0
    %v1513 = vmax.f32 %v1481, 0.0
    %v1514 = vmax.f32 %v1482, 0.0
    %v1515 = vmax.f32 %v1483, 0.0
    %v1516 = vadd.f32 %v24, %v1484
    %v1517 = vadd.f32 %v25, %v1485
    %v1518 = vadd.f32 %v26, %v1486
    %v1519 = vadd.f32 %v27, %v1487
    %v1520 = vadd.f32 %v28, %v1488
    %v1521 = vadd.f32 %v29, %v1489
    %v1522 = vadd.f32 %v30, %v1490
    %v1523 = vadd.f32 %v31, %v1491
    %v1524 = vadd.f32 %v32, %v1492
    %v1525 = vadd.f32 %v33, %v1493
    %v1526 = vadd.f32 %v34, %v1494
    %v1527 = vadd.f32 %v35, %v1495
    %v1528 = vadd.f32 %v36, %v1496
    %v1529 = vadd.f32 %v37, %v1497
    %v1530 = vadd.f32 %v38, %v1498
    %v1531 = vadd.f32 %v39, %v1499
    %v1532 = vadd.f32 %v40, %v1500
    %v1533 = vadd.f32 %v41, %v1501
    %v1534 = vadd.f32 %v42, %v1502
    %v1535 = vadd.f32 %v43, %v1503
    %v1536 = vadd.f32 %v44, %v1504
    %v1537 = vadd.f32 %v45, %v1505
    %v1538 = vadd.f32 %v46, %v1506
    %v1539 = vadd.f32 %v47, %v1507
    %v1540 = vadd.f32 %v48, %v1508
    %v1541 = vadd.f32 %v49, %v1509
    %v1542 = vadd.f32 %v50, %v1510
    %v1543 = vadd.f32 %v51, %v1511
    %v1544 = vadd.f32 %v52, %v1512
    %v1545 = vadd.f32 %v53, %v1513
    %v1546 = vadd.f32 %v54, %v1514
    %v1547 = vadd.f32 %v55, %v1515
    %1548 = vst [vmem:[%s5] sm:$0xff] %v1516
    %1549 = vst [vmem:[%s5 + $0x8] sm:$0xff] %v1517
    %1550 = vst [vmem:[%s5 + $0x10] sm:$0xff] %v1518
    %1551 = vst [vmem:[%s5 + $0x18] sm:$0xff] %v1519
    %1552 = vst [vmem:[%s5 + $0x20] sm:$0xff] %v1520
    %1553 = vst [vmem:[%s5 + $0x28] sm:$0xff] %v1521
    %1554 = vst [vmem:[%s5 + $0x30] sm:$0xff] %v1522
    %1555 = vst [vmem:[%s5 + $0x38] sm:$0xff] %v1523
    %1556 = vst [vmem:[%s5 + $0x40] sm:$0xff] %v1524
    %1557 = vst [vmem:[%s5 + $0x48] sm:$0xff] %v1525
    %1558 = vst [vmem:[%s5 + $0x50] sm:$0xff] %v1526
    %1559 = vst [vmem:[%s5 + $0x58] sm:$0xff] %v1527
    %1560 = vst [vmem:[%s5 + $0x60] sm:$0xff] %v1528
    %1561 = vst [vmem:[%s5 + $0x68] sm:$0xff] %v1529
    %1562 = vst [vmem:[%s5 + $0x70] sm:$0xff] %v1530
    %1563 = vst [vmem:[%s5 + $0x78] sm:$0xff] %v1531
    %1564 = vst [vmem:[%s5 + $0x80] sm:$0xff] %v1532
    %1565 = vst [vmem:[%s5 + $0x88] sm:$0xff] %v1533
    %1566 = vst [vmem:[%s5 + $0x90] sm:$0xff] %v1534
    %1567 = vst [vmem:[%s5 + $0x98] sm:$0xff] %v1535
    %1568 = vst [vmem:[%s5 + $0xa0] sm:$0xff] %v1536
    %1569 = vst [vmem:[%s5 + $0xa8] sm:$0xff] %v1537
    %1570 = vst [vmem:[%s5 + $0xb0] sm:$0xff] %v1538
    %1571 = vst [vmem:[%s5 + $0xb8] sm:$0xff] %v1539
    %1572 = vst [vmem:[%s5 + $0xc0] sm:$0xff] %v1540
    %1573 = vst [vmem:[%s5 + $0xc8] sm:$0xff] %v1541
    %1574 = vst [vmem:[%s5 + $0xd0] sm:$0xff] %v1542
    %1575 = vst [vmem:[%s5 + $0xd8] sm:$0xff] %v1543
    %1576 = vst [vmem:[%s5 + $0xe0] sm:$0xff] %v1544
    %1577 = vst [vmem:[%s5 + $0xe8] sm:$0xff] %v1545
    %1578 = vst [vmem:[%s5 + $0xf0] sm:$0xff] %v1546
    %1579 = vst [vmem:[%s5 + $0xf8] sm:$0xff] %v1547
    %v1580 = vsub.f32 0.0, %v1516
    %v1581 = vsub.f32 0.0, %v1517
    %v1582 = vsub.f32 0.0, %v1518
    %v1583 = vsub.f32 0.0, %v1519
    %v1584 = vsub.f32 0.0, %v1520
    %v1585 = vsub.f32 0.0, %v1521
    %v1586 = vsub.f32 0.0, %v1522
    %v1587 = vsub.f32 0.0, %v1523
    %v1588 = vsub.f32 0.0, %v1524
    %v1589 = vsub.f32 0.0, %v1525
    %v1590 = vsub.f32 0.0, %v1526
    %v1591 = vsub.f32 0.0, %v1527
    %v1592 = vsub.f32 0.0, %v1528
    %v1593 = vsub.f32 0.0, %v1529
    %v1594 = vsub.f32 0.0, %v1530
    %v1595 = vsub.f32 0.0, %v1531
    %v1596 = vsub.f32 0.0, %v1532
    %v1597 = vsub.f32 0.0, %v1533
    %v1598 = vsub.f32 0.0, %v1534
    %v1599 = vsub.f32 0.0, %v1535
    %v1600 = vsub.f32 0.0, %v1536
    %v1601 = vsub.f32 0.0, %v1537
    %v1602 = vsub.f32 0.0, %v1538
    %v1603 = vsub.f32 0.0, %v1539
    %v1604 = vsub.f32 0.0, %v1540
    %v1605 = vsub.f32 0.0, %v1541
    %v1606 = vsub.f32 0.0, %v1542
    %v1607 = vsub.f32 0.0, %v1543
    %v1608 = vsub.f32 0.0, %v1544
    %v1609 = vsub.f32 0.0, %v1545
    %v1610 = vsub.f32 0.0, %v1546
    %v1611 = vsub.f32 0.0, %v1547
    %v1612 = vmul.f32 %v1580, 1.442695
    %v1613 = vpow.pop %v1612
    %v1614 = vmul.f32 %v1581, 1.442695
    %v1615 = vpow.pop %v1614
    %v1616 = vmul.f32 %v1582, 1.442695
    %v1617 = vpow.pop %v1616
    %v1618 = vmul.f32 %v1583, 1.442695
    %v1619 = vpow.pop %v1618
    %v1620 = vmul.f32 %v1584, 1.442695
    %v1621 = vpow.pop %v1620
    %v1622 = vmul.f32 %v1585, 1.442695
    %v1623 = vpow.pop %v1622
    %v1624 = vmul.f32 %v1586, 1.442695
    %v1625 = vpow.pop %v1624
    %v1626 = vmul.f32 %v1587, 1.442695
    %v1627 = vpow.pop %v1626
    %v1628 = vmul.f32 %v1588, 1.442695
    %v1629 = vpow.pop %v1628
    %v1630 = vmul.f32 %v1589, 1.442695
    %v1631 = vpow.pop %v1630
    %v1632 = vmul.f32 %v1590, 1.442695
    %v1633 = vpow.pop %v1632
    %v1634 = vmul.f32 %v1591, 1.442695
    %v1635 = vpow.pop %v1634
    %v1636 = vmul.f32 %v1592, 1.442695
    %v1637 = vpow.pop %v1636
    %v1638 = vmul.f32 %v1593, 1.442695
    %v1639 = vpow.pop %v1638
    %v1640 = vmul.f32 %v1594, 1.442695
    %v1641 = vpow.pop %v1640
    %v1642 = vmul.f32 %v1595, 1.442695
    %v1643 = vpow.pop %v1642
    %v1644 = vmul.f32 %v1596, 1.442695
    %v1645 = vpow.pop %v1644
    %v1646 = vmul.f32 %v1597, 1.442695
    %v1647 = vpow.pop %v1646
    %v1648 = vmul.f32 %v1598, 1.442695
    %v1649 = vpow.pop %v1648
    %v1650 = vmul.f32 %v1599, 1.442695
    %v1651 = vpow.pop %v1650
    %v1652 = vmul.f32 %v1600, 1.442695
    %v1653 = vpow.pop %v1652
    %v1654 = vmul.f32 %v1601, 1.442695
    %v1655 = vpow.pop %v1654
    %v1656 = vmul.f32 %v1602, 1.442695
    %v1657 = vpow.pop %v1656
    %v1658 = vmul.f32 %v1603, 1.442695
    %v1659 = vpow.pop %v1658
    %v1660 = vmul.f32 %v1604, 1.442695
    %v1661 = vpow.pop %v1660
    %v1662 = vmul.f32 %v1605, 1.442695
    %v1663 = vpow.pop %v1662
    %v1664 = vmul.f32 %v1606, 1.442695
    %v1665 = vpow.pop %v1664
    %v1666 = vmul.f32 %v1607, 1.442695
    %v1667 = vpow.pop %v1666
    %v1668 = vmul.f32 %v1608, 1.442695
    %v1669 = vpow.pop %v1668
    %v1670 = vmul.f32 %v1609, 1.442695
    %v1671 = vpow.pop %v1670
    %v1672 = vmul.f32 %v1610, 1.442695
    %v1673 = vpow.pop %v1672
    %v1674 = vmul.f32 %v1611, 1.442695
    %v1675 = vpow.pop %v1674
    %v1676 = vadd.f32 %v1613, 1.0
    %v1677 = vadd.f32 %v1615, 1.0
    %v1678 = vadd.f32 %v1617, 1.0
    %v1679 = vadd.f32 %v1619, 1.0
    %v1680 = vadd.f32 %v1621, 1.0
    %v1681 = vadd.f32 %v1623, 1.0
    %v1682 = vadd.f32 %v1625, 1.0
    %v1683 = vadd.f32 %v1627, 1.0
    %v1684 = vadd.f32 %v1629, 1.0
    %v1685 = vadd.f32 %v1631, 1.0
    %v1686 = vadd.f32 %v1633, 1.0
    %v1687 = vadd.f32 %v1635, 1.0
    %v1688 = vadd.f32 %v1637, 1.0
    %v1689 = vadd.f32 %v1639, 1.0
    %v1690 = vadd.f32 %v1641, 1.0
    %v1691 = vadd.f32 %v1643, 1.0
    %v1692 = vadd.f32 %v1645, 1.0
    %v1693 = vadd.f32 %v1647, 1.0
    %v1694 = vadd.f32 %v1649, 1.0
    %v1695 = vadd.f32 %v1651, 1.0
    %v1696 = vadd.f32 %v1653, 1.0
    %v1697 = vadd.f32 %v1655, 1.0
    %v1698 = vadd.f32 %v1657, 1.0
    %v1699 = vadd.f32 %v1659, 1.0
    %v1700 = vadd.f32 %v1661, 1.0
    %v1701 = vadd.f32 %v1663, 1.0
    %v1702 = vadd.f32 %v1665, 1.0
    %v1703 = vadd.f32 %v1667, 1.0
    %v1704 = vadd.f32 %v1669, 1.0
    %v1705 = vadd.f32 %v1671, 1.0
    %v1706 = vadd.f32 %v1673, 1.0
    %v1707 = vadd.f32 %v1675, 1.0
    %v1708 = vrcp.pop %v1676
    %v1709 = vmul.f32 1.0, %v1708
    %v1710 = vrcp.pop %v1677
    %v1711 = vmul.f32 1.0, %v1710
    %v1712 = vrcp.pop %v1678
    %v1713 = vmul.f32 1.0, %v1712
    %v1714 = vrcp.pop %v1679
    %v1715 = vmul.f32 1.0, %v1714
    %v1716 = vrcp.pop %v1680
    %v1717 = vmul.f32 1.0, %v1716
    %v1718 = vrcp.pop %v1681
    %v1719 = vmul.f32 1.0, %v1718
    %v1720 = vrcp.pop %v1682
    %v1721 = vmul.f32 1.0, %v1720
    %v1722 = vrcp.pop %v1683
    %v1723 = vmul.f32 1.0, %v1722
    %v1724 = vrcp.pop %v1684
    %v1725 = vmul.f32 1.0, %v1724
    %v1726 = vrcp.pop %v1685
    %v1727 = vmul.f32 1.0, %v1726
    %v1728 = vrcp.pop %v1686
    %v1729 = vmul.f32 1.0, %v1728
    %v1730 = vrcp.pop %v1687
    %v1731 = vmul.f32 1.0, %v1730
    %v1732 = vrcp.pop %v1688
    %v1733 = vmul.f32 1.0, %v1732
    %v1734 = vrcp.pop %v1689
    %v1735 = vmul.f32 1.0, %v1734
    %v1736 = vrcp.pop %v1690
    %v1737 = vmul.f32 1.0, %v1736
    %v1738 = vrcp.pop %v1691
    %v1739 = vmul.f32 1.0, %v1738
    %v1740 = vrcp.pop %v1692
    %v1741 = vmul.f32 1.0, %v1740
    %v1742 = vrcp.pop %v1693
    %v1743 = vmul.f32 1.0, %v1742
    %v1744 = vrcp.pop %v1694
    %v1745 = vmul.f32 1.0, %v1744
    %v1746 = vrcp.pop %v1695
    %v1747 = vmul.f32 1.0, %v1746
    %v1748 = vrcp.pop %v1696
    %v1749 = vmul.f32 1.0, %v1748
    %v1750 = vrcp.pop %v1697
    %v1751 = vmul.f32 1.0, %v1750
    %v1752 = vrcp.pop %v1698
    %v1753 = vmul.f32 1.0, %v1752
    %v1754 = vrcp.pop %v1699
    %v1755 = vmul.f32 1.0, %v1754
    %v1756 = vrcp.pop %v1700
    %v1757 = vmul.f32 1.0, %v1756
    %v1758 = vrcp.pop %v1701
    %v1759 = vmul.f32 1.0, %v1758
    %v1760 = vrcp.pop %v1702
    %v1761 = vmul.f32 1.0, %v1760
    %v1762 = vrcp.pop %v1703
    %v1763 = vmul.f32 1.0, %v1762
    %v1764 = vrcp.pop %v1704
    %v1765 = vmul.f32 1.0, %v1764
    %v1766 = vrcp.pop %v1705
    %v1767 = vmul.f32 1.0, %v1766
    %v1768 = vrcp.pop %v1706
    %v1769 = vmul.f32 1.0, %v1768
    %v1770 = vrcp.pop %v1707
    %v1771 = vmul.f32 1.0, %v1770
    %v1772 = vmul.f32 %v1709, 1.442695
    %v1773 = vpow.pop %v1772
    %v1774 = vmul.f32 %v1711, 1.442695
    %v1775 = vpow.pop %v1774
    %v1776 = vmul.f32 %v1713, 1.442695
    %v1777 = vpow.pop %v1776
    %v1778 = vmul.f32 %v1715, 1.442695
    %v1779 = vpow.pop %v1778
    %v1780 = vmul.f32 %v1717, 1.442695
    %v1781 = vpow.pop %v1780
    %v1782 = vmul.f32 %v1719, 1.442695
    %v1783 = vpow.pop %v1782
    %v1784 = vmul.f32 %v1721, 1.442695
    %v1785 = vpow.pop %v1784
    %v1786 = vmul.f32 %v1723, 1.442695
    %v1787 = vpow.pop %v1786
    %v1788 = vmul.f32 %v1725, 1.442695
    %v1789 = vpow.pop %v1788
    %v1790 = vmul.f32 %v1727, 1.442695
    %v1791 = vpow.pop %v1790
    %v1792 = vmul.f32 %v1729, 1.442695
    %v1793 = vpow.pop %v1792
    %v1794 = vmul.f32 %v1731, 1.442695
    %v1795 = vpow.pop %v1794
    %v1796 = vmul.f32 %v1733, 1.442695
    %v1797 = vpow.pop %v1796
    %v1798 = vmul.f32 %v1735, 1.442695
    %v1799 = vpow.pop %v1798
    %v1800 = vmul.f32 %v1737, 1.442695
    %v1801 = vpow.pop %v1800
    %v1802 = vmul.f32 %v1739, 1.442695
    %v1803 = vpow.pop %v1802
    %v1804 = vmul.f32 %v1741, 1.442695
    %v1805 = vpow.pop %v1804
    %v1806 = vmul.f32 %v1743, 1.442695
    %v1807 = vpow.pop %v1806
    %v1808 = vmul.f32 %v1745, 1.442695
    %v1809 = vpow.pop %v1808
    %v1810 = vmul.f32 %v1747, 1.442695
    %v1811 = vpow.pop %v1810
    %v1812 = vmul.f32 %v1749, 1.442695
    %v1813 = vpow.pop %v1812
    %v1814 = vmul.f32 %v1751, 1.442695
    %v1815 = vpow.pop %v1814
    %v1816 = vmul.f32 %v1753, 1.442695
    %v1817 = vpow.pop %v1816
    %v1818 = vmul.f32 %v1755, 1.442695
    %v1819 = vpow.pop %v1818
    %v1820 = vmul.f32 %v1757, 1.442695
    %v1821 = vpow.pop %v1820
    %v1822 = vmul.f32 %v1759, 1.442695
    %v1823 = vpow.pop %v1822
    %v1824 = vmul.f32 %v1761, 1.442695
    %v1825 = vpow.pop %v1824
    %v1826 = vmul.f32 %v1763, 1.442695
    %v1827 = vpow.pop %v1826
    %v1828 = vmul.f32 %v1765, 1.442695
    %v1829 = vpow.pop %v1828
    %v1830 = vmul.f32 %v1767, 1.442695
    %v1831 = vpow.pop %v1830
    %v1832 = vmul.f32 %v1769, 1.442695
    %v1833 = vpow.pop %v1832
    %v1834 = vmul.f32 %v1771, 1.442695
    %v1835 = vpow.pop %v1834
    %v1836 = vmul.f32 %v1773, %v278
    %v1837 = vmul.f32 %v1775, %v278
    %v1838 = vmul.f32 %v1777, %v278
    %v1839 = vmul.f32 %v1779, %v278
    %v1840 = vmul.f32 %v1781, %v278
    %v1841 = vmul.f32 %v1783, %v278
    %v1842 = vmul.f32 %v1785, %v278
    %v1843 = vmul.f32 %v1787, %v278
    %v1844 = vmul.f32 %v1789, %v284
    %v1845 = vmul.f32 %v1791, %v284
    %v1846 = vmul.f32 %v1793, %v284
    %v1847 = vmul.f32 %v1795, %v284
    %v1848 = vmul.f32 %v1797, %v284
    %v1849 = vmul.f32 %v1799, %v284
    %v1850 = vmul.f32 %v1801, %v284
    %v1851 = vmul.f32 %v1803, %v284
    %v1852 = vmul.f32 %v1805, %v290
    %v1853 = vmul.f32 %v1807, %v290
    %v1854 = vmul.f32 %v1809, %v290
    %v1855 = vmul.f32 %v1811, %v290
    %v1856 = vmul.f32 %v1813, %v290
    %v1857 = vmul.f32 %v1815, %v290
    %v1858 = vmul.f32 %v1817, %v290
    %v1859 = vmul.f32 %v1819, %v290
    %v1860 = vmul.f32 %v1821, %v296
    %v1861 = vmul.f32 %v1823, %v296
    %v1862 = vmul.f32 %v1825, %v296
    %v1863 = vmul.f32 %v1827, %v296
    %v1864 = vmul.f32 %v1829, %v296
    %v1865 = vmul.f32 %v1831, %v296
    %v1866 = vmul.f32 %v1833, %v296
    %v1867 = vmul.f32 %v1835, %v296
    %v1868 = vrot.slane %v1836, 4
    %v1869 = vadd.f32 %v1836, %v1868
    %v1870 = vrot.slane %v1869, 2
    %v1871 = vadd.f32 %v1869, %v1870
    %v1872 = vrot.slane %v1871, 1
    %v1873 = vadd.f32 %v1871, %v1872
    %v1874 = vrot.slane %v1837, 4
    %v1875 = vadd.f32 %v1837, %v1874
    %v1876 = vrot.slane %v1875, 2
    %v1877 = vadd.f32 %v1875, %v1876
    %v1878 = vrot.slane %v1877, 1
    %v1879 = vadd.f32 %v1877, %v1878
    %v1880 = vrot.slane %v1838, 4
    %v1881 = vadd.f32 %v1838, %v1880
    %v1882 = vrot.slane %v1881, 2
    %v1883 = vadd.f32 %v1881, %v1882
    %v1884 = vrot.slane %v1883, 1
    %v1885 = vadd.f32 %v1883, %v1884
    %v1886 = vrot.slane %v1839, 4
    %v1887 = vadd.f32 %v1839, %v1886
    %v1888 = vrot.slane %v1887, 2
    %v1889 = vadd.f32 %v1887, %v1888
    %v1890 = vrot.slane %v1889, 1
    %v1891 = vadd.f32 %v1889, %v1890
    %v1892 = vrot.slane %v1840, 4
    %v1893 = vadd.f32 %v1840, %v1892
    %v1894 = vrot.slane %v1893, 2
    %v1895 = vadd.f32 %v1893, %v1894
    %v1896 = vrot.slane %v1895, 1
    %v1897 = vadd.f32 %v1895, %v1896
    %v1898 = vrot.slane %v1841, 4
    %v1899 = vadd.f32 %v1841, %v1898
    %v1900 = vrot.slane %v1899, 2
    %v1901 = vadd.f32 %v1899, %v1900
    %v1902 = vrot.slane %v1901, 1
    %v1903 = vadd.f32 %v1901, %v1902
    %v1904 = vrot.slane %v1842, 4
    %v1905 = vadd.f32 %v1842, %v1904
    %v1906 = vrot.slane %v1905, 2
    %v1907 = vadd.f32 %v1905, %v1906
    %v1908 = vrot.slane %v1907, 1
    %v1909 = vadd.f32 %v1907, %v1908
    %v1910 = vrot.slane %v1843, 4
    %v1911 = vadd.f32 %v1843, %v1910
    %v1912 = vrot.slane %v1911, 2
    %v1913 = vadd.f32 %v1911, %v1912
    %v1914 = vrot.slane %v1913, 1
    %v1915 = vadd.f32 %v1913, %v1914
    %v1916 = vrot.slane %v1844, 4
    %v1917 = vadd.f32 %v1844, %v1916
    %v1918 = vrot.slane %v1917, 2
    %v1919 = vadd.f32 %v1917, %v1918
    %v1920 = vrot.slane %v1919, 1
    %v1921 = vadd.f32 %v1919, %v1920
    %v1922 = vrot.slane %v1845, 4
    %v1923 = vadd.f32 %v1845, %v1922
    %v1924 = vrot.slane %v1923, 2
    %v1925 = vadd.f32 %v1923, %v1924
    %v1926 = vrot.slane %v1925, 1
    %v1927 = vadd.f32 %v1925, %v1926
    %v1928 = vrot.slane %v1846, 4
    %v1929 = vadd.f32 %v1846, %v1928
    %v1930 = vrot.slane %v1929, 2
    %v1931 = vadd.f32 %v1929, %v1930
    %v1932 = vrot.slane %v1931, 1
    %v1933 = vadd.f32 %v1931, %v1932
    %v1934 = vrot.slane %v1847, 4
    %v1935 = vadd.f32 %v1847, %v1934
    %v1936 = vrot.slane %v1935, 2
    %v1937 = vadd.f32 %v1935, %v1936
    %v1938 = vrot.slane %v1937, 1
    %v1939 = vadd.f32 %v1937, %v1938
    %v1940 = vrot.slane %v1848, 4
    %v1941 = vadd.f32 %v1848, %v1940
    %v1942 = vrot.slane %v1941, 2
    %v1943 = vadd.f32 %v1941, %v1942
    %v1944 = vrot.slane %v1943, 1
    %v1945 = vadd.f32 %v1943, %v1944
    %v1946 = vrot.slane %v1849, 4
    %v1947 = vadd.f32 %v1849, %v1946
    %v1948 = vrot.slane %v1947, 2
    %v1949 = vadd.f32 %v1947, %v1948
    %v1950 = vrot.slane %v1949, 1
    %v1951 = vadd.f32 %v1949, %v1950
    %v1952 = vrot.slane %v1850, 4
    %v1953 = vadd.f32 %v1850, %v1952
    %v1954 = vrot.slane %v1953, 2
    %v1955 = vadd.f32 %v1953, %v1954
    %v1956 = vrot.slane %v1955, 1
    %v1957 = vadd.f32 %v1955, %v1956
    %v1958 = vrot.slane %v1851, 4
    %v1959 = vadd.f32 %v1851, %v1958
    %v1960 = vrot.slane %v1959, 2
    %v1961 = vadd.f32 %v1959, %v1960
    %v1962 = vrot.slane %v1961, 1
    %v1963 = vadd.f32 %v1961, %v1962
    %v1964 = vrot.slane %v1852, 4
    %v1965 = vadd.f32 %v1852, %v1964
    %v1966 = vrot.slane %v1965, 2
    %v1967 = vadd.f32 %v1965, %v1966
    %v1968 = vrot.slane %v1967, 1
    %v1969 = vadd.f32 %v1967, %v1968
    %v1970 = vrot.slane %v1853, 4
    %v1971 = vadd.f32 %v1853, %v1970
    %v1972 = vrot.slane %v1971, 2
    %v1973 = vadd.f32 %v1971, %v1972
    %v1974 = vrot.slane %v1973, 1
    %v1975 = vadd.f32 %v1973, %v1974
    %v1976 = vrot.slane %v1854, 4
    %v1977 = vadd.f32 %v1854, %v1976
    %v1978 = vrot.slane %v1977, 2
    %v1979 = vadd.f32 %v1977, %v1978
    %v1980 = vrot.slane %v1979, 1
    %v1981 = vadd.f32 %v1979, %v1980
    %v1982 = vrot.slane %v1855, 4
    %v1983 = vadd.f32 %v1855, %v1982
    %v1984 = vrot.slane %v1983, 2
    %v1985 = vadd.f32 %v1983, %v1984
    %v1986 = vrot.slane %v1985, 1
    %v1987 = vadd.f32 %v1985, %v1986
    %v1988 = vrot.slane %v1856, 4
    %v1989 = vadd.f32 %v1856, %v1988
    %v1990 = vrot.slane %v1989, 2
    %v1991 = vadd.f32 %v1989, %v1990
    %v1992 = vrot.slane %v1991, 1
    %v1993 = vadd.f32 %v1991, %v1992
    %v1994 = vrot.slane %v1857, 4
    %v1995 = vadd.f32 %v1857, %v1994
    %v1996 = vrot.slane %v1995, 2
    %v1997 = vadd.f32 %v1995, %v1996
    %v1998 = vrot.slane %v1997, 1
    %v1999 = vadd.f32 %v1997, %v1998
    %v2000 = vrot.slane %v1858, 4
    %v2001 = vadd.f32 %v1858, %v2000
    %v2002 = vrot.slane %v2001, 2
    %v2003 = vadd.f32 %v2001, %v2002
    %v2004 = vrot.slane %v2003, 1
    %v2005 = vadd.f32 %v2003, %v2004
    %v2006 = vrot.slane %v1859, 4
    %v2007 = vadd.f32 %v1859, %v2006
    %v2008 = vrot.slane %v2007, 2
    %v2009 = vadd.f32 %v2007, %v2008
    %v2010 = vrot.slane %v2009, 1
    %v2011 = vadd.f32 %v2009, %v2010
    %v2012 = vrot.slane %v1860, 4
    %v2013 = vadd.f32 %v1860, %v2012
    %v2014 = vrot.slane %v2013, 2
    %v2015 = vadd.f32 %v2013, %v2014
    %v2016 = vrot.slane %v2015, 1
    %v2017 = vadd.f32 %v2015, %v2016
    %v2018 = vrot.slane %v1861, 4
    %v2019 = vadd.f32 %v1861, %v2018
    %v2020 = vrot.slane %v2019, 2
    %v2021 = vadd.f32 %v2019, %v2020
    %v2022 = vrot.slane %v2021, 1
    %v2023 = vadd.f32 %v2021, %v2022
    %v2024 = vrot.slane %v1862, 4
    %v2025 = vadd.f32 %v1862, %v2024
    %v2026 = vrot.slane %v2025, 2
    %v2027 = vadd.f32 %v2025, %v2026
    %v2028 = vrot.slane %v2027, 1
    %v2029 = vadd.f32 %v2027, %v2028
    %v2030 = vrot.slane %v1863, 4
    %v2031 = vadd.f32 %v1863, %v2030
    %v2032 = vrot.slane %v2031, 2
    %v2033 = vadd.f32 %v2031, %v2032
    %v2034 = vrot.slane %v2033, 1
    %v2035 = vadd.f32 %v2033, %v2034
    %v2036 = vrot.slane %v1864, 4
    %v2037 = vadd.f32 %v1864, %v2036
    %v2038 = vrot.slane %v2037, 2
    %v2039 = vadd.f32 %v2037, %v2038
    %v2040 = vrot.slane %v2039, 1
    %v2041 = vadd.f32 %v2039, %v2040
    %v2042 = vrot.slane %v1865, 4
    %v2043 = vadd.f32 %v1865, %v2042
    %v2044 = vrot.slane %v2043, 2
    %v2045 = vadd.f32 %v2043, %v2044
    %v2046 = vrot.slane %v2045, 1
    %v2047 = vadd.f32 %v2045, %v2046
    %v2048 = vrot.slane %v1866, 4
    %v2049 = vadd.f32 %v1866, %v2048
    %v2050 = vrot.slane %v2049, 2
    %v2051 = vadd.f32 %v2049, %v2050
    %v2052 = vrot.slane %v2051, 1
    %v2053 = vadd.f32 %v2051, %v2052
    %v2054 = vrot.slane %v1867, 4
    %v2055 = vadd.f32 %v1867, %v2054
    %v2056 = vrot.slane %v2055, 2
    %v2057 = vadd.f32 %v2055, %v2056
    %v2058 = vrot.slane %v2057, 1
    %v2059 = vadd.f32 %v2057, %v2058
    %v2060 = vrot.slane %v1773, 4
    %v2061 = vadd.f32 %v1773, %v2060
    %v2062 = vrot.slane %v2061, 2
    %v2063 = vadd.f32 %v2061, %v2062
    %v2064 = vrot.slane %v2063, 1
    %v2065 = vadd.f32 %v2063, %v2064
    %v2066 = vrot.slane %v1775, 4
    %v2067 = vadd.f32 %v1775, %v2066
    %v2068 = vrot.slane %v2067, 2
    %v2069 = vadd.f32 %v2067, %v2068
    %v2070 = vrot.slane %v2069, 1
    %v2071 = vadd.f32 %v2069, %v2070
    %v2072 = vrot.slane %v1777, 4
    %v2073 = vadd.f32 %v1777, %v2072
    %v2074 = vrot.slane %v2073, 2
    %v2075 = vadd.f32 %v2073, %v2074
    %v2076 = vrot.slane %v2075, 1
    %v2077 = vadd.f32 %v2075, %v2076
    %v2078 = vrot.slane %v1779, 4
    %v2079 = vadd.f32 %v1779, %v2078
    %v2080 = vrot.slane %v2079, 2
    %v2081 = vadd.f32 %v2079, %v2080
    %v2082 = vrot.slane %v2081, 1
    %v2083 = vadd.f32 %v2081, %v2082
    %v2084 = vrot.slane %v1781, 4
    %v2085 = vadd.f32 %v1781, %v2084
    %v2086 = vrot.slane %v2085, 2
    %v2087 = vadd.f32 %v2085, %v2086
    %v2088 = vrot.slane %v2087, 1
    %v2089 = vadd.f32 %v2087, %v2088
    %v2090 = vrot.slane %v1783, 4
    %v2091 = vadd.f32 %v1783, %v2090
    %v2092 = vrot.slane %v2091, 2
    %v2093 = vadd.f32 %v2091, %v2092
    %v2094 = vrot.slane %v2093, 1
    %v2095 = vadd.f32 %v2093, %v2094
    %v2096 = vrot.slane %v1785, 4
    %v2097 = vadd.f32 %v1785, %v2096
    %v2098 = vrot.slane %v2097, 2
    %v2099 = vadd.f32 %v2097, %v2098
    %v2100 = vrot.slane %v2099, 1
    %v2101 = vadd.f32 %v2099, %v2100
    %v2102 = vrot.slane %v1787, 4
    %v2103 = vadd.f32 %v1787, %v2102
    %v2104 = vrot.slane %v2103, 2
    %v2105 = vadd.f32 %v2103, %v2104
    %v2106 = vrot.slane %v2105, 1
    %v2107 = vadd.f32 %v2105, %v2106
    %v2108 = vrot.slane %v1789, 4
    %v2109 = vadd.f32 %v1789, %v2108
    %v2110 = vrot.slane %v2109, 2
    %v2111 = vadd.f32 %v2109, %v2110
    %v2112 = vrot.slane %v2111, 1
    %v2113 = vadd.f32 %v2111, %v2112
    %v2114 = vrot.slane %v1791, 4
    %v2115 = vadd.f32 %v1791, %v2114
    %v2116 = vrot.slane %v2115, 2
    %v2117 = vadd.f32 %v2115, %v2116
    %v2118 = vrot.slane %v2117, 1
    %v2119 = vadd.f32 %v2117, %v2118
    %v2120 = vrot.slane %v1793, 4
    %v2121 = vadd.f32 %v1793, %v2120
    %v2122 = vrot.slane %v2121, 2
    %v2123 = vadd.f32 %v2121, %v2122
    %v2124 = vrot.slane %v2123, 1
    %v2125 = vadd.f32 %v2123, %v2124
    %v2126 = vrot.slane %v1795, 4
    %v2127 = vadd.f32 %v1795, %v2126
    %v2128 = vrot.slane %v2127, 2
    %v2129 = vadd.f32 %v2127, %v2128
    %v2130 = vrot.slane %v2129, 1
    %v2131 = vadd.f32 %v2129, %v2130
    %v2132 = vrot.slane %v1797, 4
    %v2133 = vadd.f32 %v1797, %v2132
    %v2134 = vrot.slane %v2133, 2
    %v2135 = vadd.f32 %v2133, %v2134
    %v2136 = vrot.slane %v2135, 1
    %v2137 = vadd.f32 %v2135, %v2136
    %v2138 = vrot.slane %v1799, 4
    %v2139 = vadd.f32 %v1799, %v2138
    %v2140 = vrot.slane %v2139, 2
    %v2141 = vadd.f32 %v2139, %v2140
    %v2142 = vrot.slane %v2141, 1
    %v2143 = vadd.f32 %v2141, %v2142
    %v2144 = vrot.slane %v1801, 4
    %v2145 = vadd.f32 %v1801, %v2144
    %v2146 = vrot.slane %v2145, 2
    %v2147 = vadd.f32 %v2145, %v2146
    %v2148 = vrot.slane %v2147, 1
    %v2149 = vadd.f32 %v2147, %v2148
    %v2150 = vrot.slane %v1803, 4
    %v2151 = vadd.f32 %v1803, %v2150
    %v2152 = vrot.slane %v2151, 2
    %v2153 = vadd.f32 %v2151, %v2152
    %v2154 = vrot.slane %v2153, 1
    %v2155 = vadd.f32 %v2153, %v2154
    %v2156 = vrot.slane %v1805, 4
    %v2157 = vadd.f32 %v1805, %v2156
    %v2158 = vrot.slane %v2157, 2
    %v2159 = vadd.f32 %v2157, %v2158
    %v2160 = vrot.slane %v2159, 1
    %v2161 = vadd.f32 %v2159, %v2160
    %v2162 = vrot.slane %v1807, 4
    %v2163 = vadd.f32 %v1807, %v2162
    %v2164 = vrot.slane %v2163, 2
    %v2165 = vadd.f32 %v2163, %v2164
    %v2166 = vrot.slane %v2165, 1
    %v2167 = vadd.f32 %v2165, %v2166
    %v2168 = vrot.slane %v1809, 4
    %v2169 = vadd.f32 %v1809, %v2168
    %v2170 = vrot.slane %v2169, 2
    %v2171 = vadd.f32 %v2169, %v2170
    %v2172 = vrot.slane %v2171, 1
    %v2173 = vadd.f32 %v2171, %v2172
    %v2174 = vrot.slane %v1811, 4
    %v2175 = vadd.f32 %v1811, %v2174
    %v2176 = vrot.slane %v2175, 2
    %v2177 = vadd.f32 %v2175, %v2176
    %v2178 = vrot.slane %v2177, 1
    %v2179 = vadd.f32 %v2177, %v2178
    %v2180 = vrot.slane %v1813, 4
    %v2181 = vadd.f32 %v1813, %v2180
    %v2182 = vrot.slane %v2181, 2
    %v2183 = vadd.f32 %v2181, %v2182
    %v2184 = vrot.slane %v2183, 1
    %v2185 = vadd.f32 %v2183, %v2184
    %v2186 = vrot.slane %v1815, 4
    %v2187 = vadd.f32 %v1815, %v2186
    %v2188 = vrot.slane %v2187, 2
    %v2189 = vadd.f32 %v2187, %v2188
    %v2190 = vrot.slane %v2189, 1
    %v2191 = vadd.f32 %v2189, %v2190
    %v2192 = vrot.slane %v1817, 4
    %v2193 = vadd.f32 %v1817, %v2192
    %v2194 = vrot.slane %v2193, 2
    %v2195 = vadd.f32 %v2193, %v2194
    %v2196 = vrot.slane %v2195, 1
    %v2197 = vadd.f32 %v2195, %v2196
    %v2198 = vrot.slane %v1819, 4
    %v2199 = vadd.f32 %v1819, %v2198
    %v2200 = vrot.slane %v2199, 2
    %v2201 = vadd.f32 %v2199, %v2200
    %v2202 = vrot.slane %v2201, 1
    %v2203 = vadd.f32 %v2201, %v2202
    %v2204 = vrot.slane %v1821, 4
    %v2205 = vadd.f32 %v1821, %v2204
    %v2206 = vrot.slane %v2205, 2
    %v2207 = vadd.f32 %v2205, %v2206
    %v2208 = vrot.slane %v2207, 1
    %v2209 = vadd.f32 %v2207, %v2208
    %v2210 = vrot.slane %v1823, 4
    %v2211 = vadd.f32 %v1823, %v2210
    %v2212 = vrot.slane %v2211, 2
    %v2213 = vadd.f32 %v2211, %v2212
    %v2214 = vrot.slane %v2213, 1
    %v2215 = vadd.f32 %v2213, %v2214
    %v2216 = vrot.slane %v1825, 4
    %v2217 = vadd.f32 %v1825, %v2216
    %v2218 = vrot.slane %v2217, 2
    %v2219 = vadd.f32 %v2217, %v2218
    %v2220 = vrot.slane %v2219, 1
    %v2221 = vadd.f32 %v2219, %v2220
    %v2222 = vrot.slane %v1827, 4
    %v2223 = vadd.f32 %v1827, %v2222
    %v2224 = vrot.slane %v2223, 2
    %v2225 = vadd.f32 %v2223, %v2224
    %v2226 = vrot.slane %v2225, 1
    %v2227 = vadd.f32 %v2225, %v2226
    %v2228 = vrot.slane %v1829, 4
    %v2229 = vadd.f32 %v1829, %v2228
    %v2230 = vrot.slane %v2229, 2
    %v2231 = vadd.f32 %v2229, %v2230
    %v2232 = vrot.slane %v2231, 1
    %v2233 = vadd.f32 %v2231, %v2232
    %v2234 = vrot.slane %v1831, 4
    %v2235 = vadd.f32 %v1831, %v2234
    %v2236 = vrot.slane %v2235, 2
    %v2237 = vadd.f32 %v2235, %v2236
    %v2238 = vrot.slane %v2237, 1
    %v2239 = vadd.f32 %v2237, %v2238
    %v2240 = vrot.slane %v1833, 4
    %v2241 = vadd.f32 %v1833, %v2240
    %v2242 = vrot.slane %v2241, 2
    %v2243 = vadd.f32 %v2241, %v2242
    %v2244 = vrot.slane %v2243, 1
    %v2245 = vadd.f32 %v2243, %v2244
    %v2246 = vrot.slane %v1835, 4
    %v2247 = vadd.f32 %v1835, %v2246
    %v2248 = vrot.slane %v2247, 2
    %v2249 = vadd.f32 %v2247, %v2248
    %v2250 = vrot.slane %v2249, 1
    %v2251 = vadd.f32 %v2249, %v2250
    %v2252 = vrcp.pop %v2065
    %v2253 = vrcp.pop %v2071
    %v2254 = vrcp.pop %v2077
    %v2255 = vrcp.pop %v2083
    %v2256 = vrcp.pop %v2089
    %v2257 = vrcp.pop %v2095
    %v2258 = vrcp.pop %v2101
    %v2259 = vrcp.pop %v2107
    %v2260 = vrcp.pop %v2113
    %v2261 = vrcp.pop %v2119
    %v2262 = vrcp.pop %v2125
    %v2263 = vrcp.pop %v2131
    %v2264 = vrcp.pop %v2137
    %v2265 = vrcp.pop %v2143
    %v2266 = vrcp.pop %v2149
    %v2267 = vrcp.pop %v2155
    %v2268 = vrcp.pop %v2161
    %v2269 = vrcp.pop %v2167
    %v2270 = vrcp.pop %v2173
    %v2271 = vrcp.pop %v2179
    %v2272 = vrcp.pop %v2185
    %v2273 = vrcp.pop %v2191
    %v2274 = vrcp.pop %v2197
    %v2275 = vrcp.pop %v2203
    %v2276 = vrcp.pop %v2209
    %v2277 = vrcp.pop %v2215
    %v2278 = vrcp.pop %v2221
    %v2279 = vrcp.pop %v2227
    %v2280 = vrcp.pop %v2233
    %v2281 = vrcp.pop %v2239
    %v2282 = vrcp.pop %v2245
    %v2283 = vrcp.pop %v2251
    %v2284 = vmul.f32 %v1873, %v2252
    %v2285 = vmul.f32 %v1879, %v2253
    %v2286 = vmul.f32 %v1885, %v2254
    %v2287 = vmul.f32 %v1891, %v2255
    %v2288 = vmul.f32 %v1897, %v2256
    %v2289 = vmul.f32 %v1903, %v2257
    %v2290 = vmul.f32 %v1909, %v2258
    %v2291 = vmul.f32 %v1915, %v2259
    %v2292 = vmul.f32 %v1921, %v2260
    %v2293 = vmul.f32 %v1927, %v2261
    %v2294 = vmul.f32 %v1933, %v2262
    %v2295 = vmul.f32 %v1939, %v2263
    %v2296 = vmul.f32 %v1945, %v2264
    %v2297 = vmul.f32 %v1951, %v2265
    %v2298 = vmul.f32 %v1957, %v2266
    %v2299 = vmul.f32 %v1963, %v2267
    %v2300 = vmul.f32 %v1969, %v2268
    %v2301 = vmul.f32 %v1975, %v2269
    %v2302 = vmul.f32 %v1981, %v2270
    %v2303 = vmul.f32 %v1987, %v2271
    %v2304 = vmul.f32 %v1993, %v2272
    %v2305 = vmul.f32 %v1999, %v2273
    %v2306 = vmul.f32 %v2005, %v2274
    %v2307 = vmul.f32 %v2011, %v2275
    %v2308 = vmul.f32 %v2017, %v2276
    %v2309 = vmul.f32 %v2023, %v2277
    %v2310 = vmul.f32 %v2029, %v2278
    %v2311 = vmul.f32 %v2035, %v2279
    %v2312 = vmul.f32 %v2041, %v2280
    %v2313 = vmul.f32 %v2047, %v2281
    %v2314 = vmul.f32 %v2053, %v2282
    %v2315 = vmul.f32 %v2059, %v2283
    %v2316 = vmul.f32 %v2284, 0.125
    %v2317 = vmul.f32 %v2285, 0.125
    %v2318 = vmul.f32 %v2286, 0.125
    %v2319 = vmul.f32 %v2287, 0.125
    %v2320 = vmul.f32 %v2288, 0.125
    %v2321 = vmul.f32 %v2289, 0.125
    %v2322 = vmul.f32 %v2290, 0.125
    %v2323 = vmul.f32 %v2291, 0.125
    %v2324 = vmul.f32 %v2292, 0.125
    %v2325 = vmul.f32 %v2293, 0.125
    %v2326 = vmul.f32 %v2294, 0.125
    %v2327 = vmul.f32 %v2295, 0.125
    %v2328 = vmul.f32 %v2296, 0.125
    %v2329 = vmul.f32 %v2297, 0.125
    %v2330 = vmul.f32 %v2298, 0.125
    %v2331 = vmul.f32 %v2299, 0.125
    %v2332 = vmul.f32 %v2300, 0.125
    %v2333 = vmul.f32 %v2301, 0.125
    %v2334 = vmul.f32 %v2302, 0.125
    %v2335 = vmul.f32 %v2303, 0.125
    %v2336 = vmul.f32 %v2304, 0.125
    %v2337 = vmul.f32 %v2305, 0.125
    %v2338 = vmul.f32 %v2306, 0.125
    %v2339 = vmul.f32 %v2307, 0.125
    %v2340 = vmul.f32 %v2308, 0.125
    %v2341 = vmul.f32 %v2309, 0.125
    %v2342 = vmul.f32 %v2310, 0.125
    %v2343 = vmul.f32 %v2311, 0.125
    %v2344 = vmul.f32 %v2312, 0.125
    %v2345 = vmul.f32 %v2313, 0.125
    %v2346 = vmul.f32 %v2314, 0.125
    %v2347 = vmul.f32 %v2315, 0.125
    %vm2380 = vcmask 1041409
    %v2381 = vsel %vm2380, %v2317, %v2316
    %vm2382 = vcmask 1042434
    %v2383 = vsel %vm2382, %v2318, %v2381
    %vm2384 = vcmask 1043459
    %v2385 = vsel %vm2384, %v2319, %v2383
    %vm2386 = vcmask 1044484
    %v2387 = vsel %vm2386, %v2320, %v2385
    %vm2388 = vcmask 1045509
    %v2389 = vsel %vm2388, %v2321, %v2387
    %vm2390 = vcmask 1046534
    %v2391 = vsel %vm2390, %v2322, %v2389
    %vm2392 = vcmask 1047559
    %v2393 = vsel %vm2392, %v2323, %v2391
    %v2394 = vsel %vm2380, %v2325, %v2324
    %v2395 = vsel %vm2382, %v2326, %v2394
    %v2396 = vsel %vm2384, %v2327, %v2395
    %v2397 = vsel %vm2386, %v2328, %v2396
    %v2398 = vsel %vm2388, %v2329, %v2397
    %v2399 = vsel %vm2390, %v2330, %v2398
    %v2400 = vsel %vm2392, %v2331, %v2399
    %v2401 = vsel %vm2380, %v2333, %v2332
    %v2402 = vsel %vm2382, %v2334, %v2401
    %v2403 = vsel %vm2384, %v2335, %v2402
    %v2404 = vsel %vm2386, %v2336, %v2403
    %v2405 = vsel %vm2388, %v2337, %v2404
    %v2406 = vsel %vm2390, %v2338, %v2405
    %v2407 = vsel %vm2392, %v2339, %v2406
    %v2408 = vsel %vm2380, %v2341, %v2340
    %v2409 = vsel %vm2382, %v2342, %v2408
    %v2410 = vsel %vm2384, %v2343, %v2409
    %v2411 = vsel %vm2386, %v2344, %v2410
    %v2412 = vsel %vm2388, %v2345, %v2411
    %v2413 = vsel %vm2390, %v2346, %v2412
    %v2414 = vsel %vm2392, %v2347, %v2413
    %v2419 = vadd.f32 %v276, %v2393
    %v2420 = vadd.f32 %v282, %v2400
    %v2421 = vadd.f32 %v288, %v2407
    %v2422 = vadd.f32 %v294, %v2414
    %2423 = vadd.xlane.f32.xlu0 %v2419
    %v2424 = vpop.xlane.xlu0 %2423
    %2425 = vadd.xlane.f32.xlu0 %v2420
    %v2426 = vpop.xlane.xlu0 %2425
    %2427 = vadd.xlane.f32.xlu0 %v2421
    %v2428 = vpop.xlane.xlu0 %2427
    %2429 = vadd.xlane.f32.xlu0 %v2422
    %v2430 = vpop.xlane.xlu0 %2429
    %v2431 = vmul.f32 %v2424, 0.03125
    %v2432 = vmul.f32 %v2426, 0.03125
    %v2433 = vmul.f32 %v2428, 0.03125
    %v2434 = vmul.f32 %v2430, 0.03125
    %v2435 = vmul.f32 %v2419, %v2419
    %v2436 = vmul.f32 %v2420, %v2420
    %v2437 = vmul.f32 %v2421, %v2421
    %v2438 = vmul.f32 %v2422, %v2422
    %2439 = vadd.xlane.f32.xlu0 %v2435
    %v2440 = vpop.xlane.xlu0 %2439
    %2441 = vadd.xlane.f32.xlu0 %v2436
    %v2442 = vpop.xlane.xlu0 %2441
    %2443 = vadd.xlane.f32.xlu0 %v2437
    %v2444 = vpop.xlane.xlu0 %2443
    %2445 = vadd.xlane.f32.xlu0 %v2438
    %v2446 = vpop.xlane.xlu0 %2445
    %v2447 = vmul.f32 %v2440, 0.03125
    %v2448 = vmul.f32 %v2442, 0.03125
    %v2449 = vmul.f32 %v2444, 0.03125
    %v2450 = vmul.f32 %v2446, 0.03125
    %v2451 = vmul.f32 %v2431, %v2431
    %v2452 = vmul.f32 %v2432, %v2432
    %v2453 = vmul.f32 %v2433, %v2433
    %v2454 = vmul.f32 %v2434, %v2434
    %v2455 = vsub.f32 %v2447, %v2451
    %v2456 = vsub.f32 %v2448, %v2452
    %v2457 = vsub.f32 %v2449, %v2453
    %v2458 = vsub.f32 %v2450, %v2454
    %v2459 = vmax.f32 %v2455, 0.0
    %v2460 = vmax.f32 %v2456, 0.0
    %v2461 = vmax.f32 %v2457, 0.0
    %v2462 = vmax.f32 %v2458, 0.0
    %v2463 = vsub.f32 %v2419, %v2431
    %v2464 = vsub.f32 %v2420, %v2432
    %v2465 = vsub.f32 %v2421, %v2433
    %v2466 = vsub.f32 %v2422, %v2434
    %v2467 = vadd.f32 %v2459, 1e-05
    %v2468 = vadd.f32 %v2460, 1e-05
    %v2469 = vadd.f32 %v2461, 1e-05
    %v2470 = vadd.f32 %v2462, 1e-05
    %v2471 = vrsqrt.pop %v2467
    %v2472 = vrsqrt.pop %v2468
    %v2473 = vrsqrt.pop %v2469
    %v2474 = vrsqrt.pop %v2470
    %v2475 = vmul.f32 %v2463, %v2471
    %v2476 = vmul.f32 %v2464, %v2472
    %v2477 = vmul.f32 %v2465, %v2473
    %v2478 = vmul.f32 %v2466, %v2474
    %v2479 = vlaneseq
    %v2480 = vshrl.u32 %v2479, 7
    %v2481 = vsub.s32 2, %v2480
    %v2482 = vrot.slane %v539, %v2481
    %v2483 = vmul.f32 %v2475, %v2482
    %v2484 = vmul.f32 %v2476, %v2482
    %v2485 = vmul.f32 %v2477, %v2482
    %v2486 = vmul.f32 %v2478, %v2482
    %v2487 = vlaneseq
    %v2488 = vshrl.u32 %v2487, 7
    %v2489 = vsub.s32 3, %v2488
    %v2490 = vrot.slane %v539, %v2489
    %v2491 = vadd.f32 %v2483, %v2490
    %v2492 = vadd.f32 %v2484, %v2490
    %v2493 = vadd.f32 %v2485, %v2490
    %v2494 = vadd.f32 %v2486, %v2490
    %v2495 = vadd.f32 %v20, %v2491
    %v2496 = vadd.f32 %v21, %v2492
    %v2497 = vadd.f32 %v22, %v2493
    %v2498 = vadd.f32 %v23, %v2494
    %v2499 = vmax.f32 %v2495, 0.0
    %v2500 = vmax.f32 %v2496, 0.0
    %v2501 = vmax.f32 %v2497, 0.0
    %v2502 = vmax.f32 %v2498, 0.0
    %2503 = vst [vmem:[#allocation2] sm:$0xff] %v2499
    %2504 = vst [vmem:[#allocation2 + $0x8] sm:$0xff] %v2500
    %2505 = vst [vmem:[#allocation2 + $0x10] sm:$0xff] %v2501
    %2506 = vst [vmem:[#allocation2 + $0x18] sm:$0xff] %v2502
    // Predicated region
    $region18: #{gnn_edge_1layer.1} parent=1 // pred_check
      _
    $region19: #{gnn_edge_1layer.1} parent=1 // pred_check_branch
      %2508 = sbr.rel (0) target = $region21
    $region20: #{gnn_edge_1layer.1} parent=1 // pred_region
      %s2510 = ssub.s32 512, 512
      %2511 = vsyncadd [#allocation3], %s2510
      %s2512 = sshll.u32 [#allocation2], 4
      %s2513 = int_to_ptr.vmem [resolvable:$true] %s2512
      %2518 = dma.vmem_to_hbm [thread:$0]  %s2513, 512, %s4, [#allocation3], 128, 128, 8
    $region21: #{gnn_edge_1layer.1} parent=1 // pred_fallthru
      _
    // Predicated region
    $region22: #{gnn_edge_1layer.1} parent=1 // pred_check
      _
    $region23: #{gnn_edge_1layer.1} parent=1 // pred_check_branch
      %2520 = sbr.rel (0) target = $region25
    $region24: #{gnn_edge_1layer.1} parent=1 // pred_region
      _
    $region25: #{gnn_edge_1layer.1} parent=1 // pred_fallthru
      _
    // Predicated region
    $region26: #{gnn_edge_1layer.1} parent=1 // pred_check
      _
    $region27: #{gnn_edge_1layer.1} parent=1 // pred_check_branch
      %2522 = sbr.rel (0) target = $region29
    $region28: #{gnn_edge_1layer.1} parent=1 // pred_region
      %2523 = dma.done [#allocation3], 512
    $region29: #{gnn_edge_1layer.1} parent=1 // pred_fallthru
      _
    // Predicated region
    $region30: #{gnn_edge_1layer.1} parent=1 // pred_check
      _
    $region31: #{gnn_edge_1layer.1} parent=1 // pred_check_branch
      %2525 = sbr.rel (0) target = $region33
    $region32: #{gnn_edge_1layer.1} parent=1 // pred_region
      _
    $region33: #{gnn_edge_1layer.1} parent=1 // pred_fallthru
      _
    %2526 = vsyncpa [#allocation3], 1

</llo_original>
